<compile_context>
chip_gen: v6e
topology: v6e:2x2x1
jax: 0.10.0
libtpu: 0.0.40
codegen_flags: <defaults>
</compile_context>

<pallas_src>
import functools

import jax
import jax.numpy as jnp
from jax import lax
from jax.experimental import pallas as pl
from jax.experimental.pallas import tpu as pltpu

LN_EPS = 1e-5  # torch nn.LayerNorm default


def _layernorm(x, gamma, beta):
    mu = jnp.mean(x, axis=-1, keepdims=True)
    xc = x - mu                                   # centered value kept in a temporary
    var = jnp.mean(xc * xc, axis=-1, keepdims=True)  # biased, like torch
    return xc * lax.rsqrt(var + LN_EPS) * gamma + beta


def _gelu_exact(x):
    # exact GELU (torch nn.GELU default)
    return 0.5 * x * (1.0 + lax.erf(x * (2.0 ** -0.5)))


def flashformer_kernel(
    xt_ref, vt_ref, attn_ref,
    g1_ref, b1_ref, wo_ref, bo_ref,
    g2_ref, b2_ref, w1_ref, bf1_ref, w2_ref, bf2_ref,
    gn_ref, bn_ref,
    xt_out_ref, vt_out_ref,
    *, heads,
):
    l = pl.program_id(1)

    # Layer axis is "arbitrary" with a constant output block index -> xt_out/vt_out are
    # VMEM-resident accumulators across the whole depth loop. Initialize at l == 0.
    @pl.when(l == 0)
    def _():
        xt_out_ref[...] = xt_ref[...]
        vt_out_ref[...] = vt_ref[...]

    x = xt_out_ref[0]                              # (N, D) f32 resident state
    n, d = x.shape
    dh = d // heads

    # ---- PreNorm + "static" attention (is_SA=False, is_ss=True, is_sdm=True) ----
    xn = _layernorm(x, g1_ref[0], b1_ref[0]).astype(jnp.bfloat16)   # (N, D)
    attn = attn_ref[0]                              # (H, N, N) bf16, precomputed dqk*mask
    wo = wo_ref[0]                                  # (D, D)    bf16
    # concat_h(attn[h] @ xn_h) @ Wo  ==  sum_h (attn[h] @ xn_h) @ Wo[h*dh:(h+1)*dh, :]
    # -> no lane-axis concatenate; each head adds a full-width (N, D) slab (f32 acc).
    acc = jnp.zeros((n, d), jnp.float32)
    for h in range(heads):
        ho = jnp.dot(attn[h], xn[:, h * dh:(h + 1) * dh],
                     preferred_element_type=jnp.float32)            # (N, dh)
        acc = acc + jnp.dot(ho.astype(jnp.bfloat16),
                            wo[h * dh:(h + 1) * dh, :],
                            preferred_element_type=jnp.float32)     # (N, D)
    x = x + acc + bo_ref[0]                         # residual (dropout/drop_path = identity)

    # ---- PreNorm + FeedForward ----
    xn2 = _layernorm(x, g2_ref[0], b2_ref[0]).astype(jnp.bfloat16)
    h1 = _gelu_exact(
        jnp.dot(xn2, w1_ref[0], preferred_element_type=jnp.float32) + bf1_ref[0])
    ff = jnp.dot(h1.astype(jnp.bfloat16), w2_ref[0],
                 preferred_element_type=jnp.float32) + bf2_ref[0]
    x = x + ff

    # ---- vertical token: shared LayerNorm(mean_n(x) + vt) ----
    s = jnp.mean(x, axis=0, keepdims=True) + vt_out_ref[0]
    vt_out_ref[0] = _layernorm(s, gn_ref[0], bn_ref[0])
    xt_out_ref[0] = x


def flashformer_forward(x, params, mask, *, heads, depth):
    vt = x[:, :1, :]
    xt = x[:, 1:, :]
    B, N, D = xt.shape
    L, H = depth, heads
    Hd = params["layers"][0]["w1"].shape[1]

    stack = lambda name: jnp.stack(
        [params["layers"][i][name] for i in range(L)], axis=0)

    # Hoist the batch-invariant attn = dynamicqk * decay_mask out of the kernel
    # (computed once per layer here, not once per batch element per layer) — bf16.
    attn = jnp.stack(
        [params["layers"][i]["dqk"][None, :, :] * mask for i in range(L)], axis=0
    ).astype(jnp.bfloat16)                                        # (L, H, N, N)

    wo = stack("wo").astype(jnp.bfloat16)                          # (L, D, D)
    w1 = stack("w1").astype(jnp.bfloat16)                          # (L, D, Hd)
    w2 = stack("w2").astype(jnp.bfloat16)                          # (L, Hd, D)
    g1, b1, bo = stack("g1"), stack("b1"), stack("bo")             # (L, 1, D) f32
    g2, b2, bf2 = stack("g2"), stack("b2"), stack("bf2")           # (L, 1, D) f32
    bf1 = stack("bf1")                                             # (L, 1, Hd) f32
    gn, bn = params["gn"], params["bn"]                            # (1, D) f32

    # Explicit VMEM budget (sized against v7x: 64 MiB physical / ~32 MiB scoped).
    f32b, bf16b = 4, 2
    block_bytes = (
        N * D * f32b + D * f32b                       # xt, vt inputs
        + H * N * N * bf16b                           # attn
        + 6 * D * f32b + Hd * f32b                    # biases / LN params per layer
        + D * D * bf16b + 2 * D * Hd * bf16b          # wo, w1, w2
        + 2 * D * f32b                                # gn, bn
        + N * D * f32b + D * f32b                     # xt, vt outputs (resident)
    )
    vmem_limit = int(min(64 * 1024 * 1024,
                         max(16 * 1024 * 1024, 2 * block_bytes + (8 << 20))))

    per_layer_vec_d = pl.BlockSpec((1, 1, D), lambda b, l: (l, 0, 0))
    per_layer_vec_h = pl.BlockSpec((1, 1, Hd), lambda b, l: (l, 0, 0))

    xt_out, vt_out = pl.pallas_call(
        functools.partial(flashformer_kernel, heads=heads),
        out_shape=(jax.ShapeDtypeStruct((B, N, D), jnp.float32),
                   jax.ShapeDtypeStruct((B, 1, D), jnp.float32)),
        grid_spec=pltpu.PrefetchScalarGridSpec(
            num_scalar_prefetch=0,
            grid=(B, L),
            in_specs=[
                pl.BlockSpec((1, N, D), lambda b, l: (b, 0, 0)),         # xt
                pl.BlockSpec((1, 1, D), lambda b, l: (b, 0, 0)),         # vt
                pl.BlockSpec((1, H, N, N), lambda b, l: (l, 0, 0, 0)),   # attn = dqk*mask
                per_layer_vec_d, per_layer_vec_d,                        # LN1 gamma/beta
                pl.BlockSpec((1, D, D), lambda b, l: (l, 0, 0)),         # to_out W
                per_layer_vec_d,                                         # to_out b
                per_layer_vec_d, per_layer_vec_d,                        # LN2 gamma/beta
                pl.BlockSpec((1, D, Hd), lambda b, l: (l, 0, 0)),        # FF W1
                per_layer_vec_h,                                         # FF b1
                pl.BlockSpec((1, Hd, D), lambda b, l: (l, 0, 0)),        # FF W2
                per_layer_vec_d,                                         # FF b2
                pl.BlockSpec((1, D), lambda b, l: (0, 0)),               # shared norm gamma
                pl.BlockSpec((1, D), lambda b, l: (0, 0)),               # shared norm beta
            ],
            out_specs=[
                pl.BlockSpec((1, N, D), lambda b, l: (b, 0, 0)),
                pl.BlockSpec((1, 1, D), lambda b, l: (b, 0, 0)),
            ],
        ),
        compiler_params=pltpu.CompilerParams(
            dimension_semantics=("parallel", "arbitrary"),
            vmem_limit_bytes=vmem_limit),
    )(xt, vt, attn, g1, b1, wo, bo, g2, b2, w1, bf1, w2, bf2, gn, bn)

    return jnp.concatenate([vt_out, xt_out], axis=1)


# ---------------- parameter init (deterministic, synthetic) ----------------
def _xavier_normal(key, fan_in, fan_out):
    std = (2.0 / (fan_in + fan_out)) ** 0.5
    return std * jax.random.normal(key, (fan_in, fan_out), jnp.float32)


def init_params(key, dim, num_patches, depth, heads, mlp_ratio):
    hidden = dim * mlp_ratio
    layers = []
    lkeys = jax.random.split(key, depth)
    for i in range(depth):
        k = jax.random.split(lkeys[i], 4)
        layers.append(dict(
            # NOTE: torch initializes dynamicqk to zeros; small random values are used
            # here so the attention matmul path is numerically exercised.
            dqk=0.05 * jax.random.normal(k[0], (num_patches, num_patches), jnp.float32),
            g1=jnp.ones((1, dim), jnp.float32), b1=jnp.zeros((1, dim), jnp.float32),
            wo=_xavier_normal(k[1], dim, dim),  bo=jnp.zeros((1, dim), jnp.float32),
            g2=jnp.ones((1, dim), jnp.float32), b2=jnp.zeros((1, dim), jnp.float32),
            w1=_xavier_normal(k[2], dim, hidden), bf1=jnp.zeros((1, hidden), jnp.float32),
            w2=_xavier_normal(k[3], hidden, dim), bf2=jnp.zeros((1, dim), jnp.float32),
        ))
    params = dict(layers=layers,
                  gn=jnp.ones((1, dim), jnp.float32),
                  bn=jnp.zeros((1, dim), jnp.float32))
    # decay mask (is_sdm=True requires a user-supplied mask): per-head exponential decay
    idx = jnp.arange(num_patches)
    dist = jnp.abs(idx[:, None] - idx[None, :]).astype(jnp.float32)
    gammas = 1.0 - 2.0 ** (-(jnp.arange(heads, dtype=jnp.float32) + 3.0))
    mask = gammas[:, None, None] ** dist[None]       # (H, N, N)
    return params, mask


# ---------------- pure-JAX reference (f32) for validation ----------------
def flashformer_ref(x, params, mask, heads, depth):
    vt = x[:, :1, :]
    xt = x[:, 1:, :]
    B, N, D = xt.shape
    dh = D // heads
    for i in range(depth):
        p = params["layers"][i]
        xn = _layernorm(xt, p["g1"], p["b1"])
        v = xn.reshape(B, N, heads, dh).transpose(0, 2, 1, 3)            # b h n d
        attn = jnp.broadcast_to(p["dqk"][None, None] * mask[None], (B, heads, N, N))
        out = jnp.einsum("bhij,bhjd->bhid", attn, v)
        out = out.transpose(0, 2, 1, 3).reshape(B, N, D)
        xt = xt + (out @ p["wo"] + p["bo"])
        xn2 = _layernorm(xt, p["g2"], p["b2"])
        h1 = _gelu_exact(xn2 @ p["w1"] + p["bf1"])
        xt = xt + (h1 @ p["w2"] + p["bf2"])
        vt = _layernorm(xt.mean(axis=1, keepdims=True) + vt, params["gn"], params["bn"])
    return jnp.concatenate([vt, xt], axis=1)


if __name__ == "__main__":
    # small shapes: dim = heads * dim_head (required for to_out to type-check)
    B, num_patches, dim, heads, dim_head, depth, mlp_ratio = 2, 8, 32, 4, 8, 2, 2

    key = jax.random.PRNGKey(0)
    kx, kp = jax.random.split(key)
    x = jax.random.normal(kx, (B, num_patches + 1, dim), jnp.float32)   # (2, 9, 32)
    params, mask = init_params(kp, dim, num_patches, depth, heads, mlp_ratio)

    fwd = jax.jit(flashformer_forward, static_argnames=("heads", "depth"))
    out = fwd(x, params, mask, heads=heads, depth=depth)
    out = jax.block_until_ready(out)

    ref = flashformer_ref(x, params, mask, heads, depth)
    assert out.shape == (B, num_patches + 1, dim)
    # bf16 MXU operands with f32 accumulation -> slightly loosened tolerance vs f32 ref.
    assert jnp.allclose(out, ref, atol=5e-2, rtol=5e-2), "mismatch vs JAX reference"
    print("KERNEL_OK")
</pallas_src>

<mosaic_0001>
module attributes {stable_mosaic.version = 11 : i64} {
  func.func @flashformer_kernel(%arg0: i32, %arg1: i32, %arg2: memref<1x8x32xf32, #tpu.memory_space<vmem>>, %arg3: memref<1x1x32xf32, #tpu.memory_space<vmem>>, %arg4: memref<1x4x8x8xbf16, #tpu.memory_space<vmem>>, %arg5: memref<1x1x32xf32, #tpu.memory_space<vmem>>, %arg6: memref<1x1x32xf32, #tpu.memory_space<vmem>>, %arg7: memref<1x32x32xbf16, #tpu.memory_space<vmem>>, %arg8: memref<1x1x32xf32, #tpu.memory_space<vmem>>, %arg9: memref<1x1x32xf32, #tpu.memory_space<vmem>>, %arg10: memref<1x1x32xf32, #tpu.memory_space<vmem>>, %arg11: memref<1x32x64xbf16, #tpu.memory_space<vmem>>, %arg12: memref<1x1x64xf32, #tpu.memory_space<vmem>>, %arg13: memref<1x64x32xbf16, #tpu.memory_space<vmem>>, %arg14: memref<1x1x32xf32, #tpu.memory_space<vmem>>, %arg15: memref<1x32xf32, #tpu.memory_space<vmem>>, %arg16: memref<1x32xf32, #tpu.memory_space<vmem>>, %arg17: memref<1x8x32xf32, #tpu.memory_space<vmem>>, %arg18: memref<1x1x32xf32, #tpu.memory_space<vmem>>) attributes {dimension_semantics = [#tpu.dimension_semantics<parallel>, #tpu.dimension_semantics<arbitrary>], iteration_bounds = array<i64: 2, 2>, scalar_prefetch = 0 : i64, scratch_operands = 0 : i64, tpu.core_type = #tpu.core_type<tc>, window_params = [{transform_indices = @transform_0, window_bounds = array<i64: 1, 8, 32>}, {transform_indices = @transform_1, window_bounds = array<i64: 1, 1, 32>}, {transform_indices = @transform_2, window_bounds = array<i64: 1, 4, 8, 8>}, {transform_indices = @transform_3, window_bounds = array<i64: 1, 1, 32>}, {transform_indices = @transform_4, window_bounds = array<i64: 1, 1, 32>}, {transform_indices = @transform_5, window_bounds = array<i64: 1, 32, 32>}, {transform_indices = @transform_6, window_bounds = array<i64: 1, 1, 32>}, {transform_indices = @transform_7, window_bounds = array<i64: 1, 1, 32>}, {transform_indices = @transform_8, window_bounds = array<i64: 1, 1, 32>}, {transform_indices = @transform_9, window_bounds = array<i64: 1, 32, 64>}, {transform_indices = @transform_10, window_bounds = array<i64: 1, 1, 64>}, {transform_indices = @transform_11, window_bounds = array<i64: 1, 64, 32>}, {transform_indices = @transform_12, window_bounds = array<i64: 1, 1, 32>}, {pipeline_mode = #tpu.pipeline_mode<synchronous>, transform_indices = @transform_13, window_bounds = array<i64: 1, 32>}, {pipeline_mode = #tpu.pipeline_mode<synchronous>, transform_indices = @transform_14, window_bounds = array<i64: 1, 32>}, {transform_indices = @transform_15, window_bounds = array<i64: 1, 8, 32>}, {transform_indices = @transform_16, window_bounds = array<i64: 1, 1, 32>}]} {
    %c0_i32 = arith.constant 0 : i32
    %0 = arith.cmpi eq, %arg1, %c0_i32 : i32
    %1 = arith.extui %0 : i1 to i32
    %c0_i32_0 = arith.constant 0 : i32
    %2 = arith.cmpi ne, %1, %c0_i32_0 : i32
    scf.if %2 {
      %c0_80 = arith.constant 0 : index
      %c0_81 = arith.constant 0 : index
      %c0_82 = arith.constant 0 : index
      %158 = vector.load %arg2[%c0_80, %c0_81, %c0_82] : memref<1x8x32xf32, #tpu.memory_space<vmem>>, vector<1x8x32xf32>
      %c0_83 = arith.constant 0 : index
      %c0_84 = arith.constant 0 : index
      %c0_85 = arith.constant 0 : index
      %159 = vector.load %arg17[%c0_83, %c0_84, %c0_85] : memref<1x8x32xf32, #tpu.memory_space<vmem>>, vector<1x8x32xf32>
      tpu.vector_store %arg17[%c0_83, %c0_84, %c0_85], %158 {strides = array<i32>} : memref<1x8x32xf32, #tpu.memory_space<vmem>>, vector<1x8x32xf32>,
      %c0_86 = arith.constant 0 : index
      %c0_87 = arith.constant 0 : index
      %c0_88 = arith.constant 0 : index
      %160 = vector.load %arg3[%c0_86, %c0_87, %c0_88] : memref<1x1x32xf32, #tpu.memory_space<vmem>>, vector<1x1x32xf32>
      %c0_89 = arith.constant 0 : index
      %c0_90 = arith.constant 0 : index
      %c0_91 = arith.constant 0 : index
      %161 = vector.load %arg18[%c0_89, %c0_90, %c0_91] : memref<1x1x32xf32, #tpu.memory_space<vmem>>, vector<1x1x32xf32>
      tpu.vector_store %arg18[%c0_89, %c0_90, %c0_91], %160 {strides = array<i32>} : memref<1x1x32xf32, #tpu.memory_space<vmem>>, vector<1x1x32xf32>,
    } else {
    }
    %c0 = arith.constant 0 : index
    %c0_1 = arith.constant 0 : index
    %c0_2 = arith.constant 0 : index
    %3 = vector.load %arg17[%c0, %c0_1, %c0_2] : memref<1x8x32xf32, #tpu.memory_space<vmem>>, vector<1x8x32xf32>
    %4 = vector.shape_cast %3 : vector<1x8x32xf32> to vector<8x32xf32>
    %c0_3 = arith.constant 0 : index
    %c0_4 = arith.constant 0 : index
    %c0_5 = arith.constant 0 : index
    %5 = vector.load %arg5[%c0_3, %c0_4, %c0_5] : memref<1x1x32xf32, #tpu.memory_space<vmem>>, vector<1x1x32xf32>
    %6 = vector.shape_cast %5 : vector<1x1x32xf32> to vector<1x32xf32>
    %c0_6 = arith.constant 0 : index
    %c0_7 = arith.constant 0 : index
    %c0_8 = arith.constant 0 : index
    %7 = vector.load %arg6[%c0_6, %c0_7, %c0_8] : memref<1x1x32xf32, #tpu.memory_space<vmem>>, vector<1x1x32xf32>
    %8 = vector.shape_cast %7 : vector<1x1x32xf32> to vector<1x32xf32>
    %cst = arith.constant dense<0.000000e+00> : vector<8xf32>
    %9 = vector.multi_reduction <add>, %4, %cst [1] : vector<8x32xf32> to vector<8xf32>
    %10 = vector.shape_cast %9 : vector<8xf32> to vector<8x1xf32>
    %cst_9 = arith.constant 3.200000e+01 : f32
    %11 = vector.broadcast %cst_9 : f32 to vector<8x1xf32>
    %12 = arith.divf %10, %11 : vector<8x1xf32>
    %13 = vector.broadcast %12 : vector<8x1xf32> to vector<8x32xf32>
    %14 = arith.subf %4, %13 : vector<8x32xf32>
    %15 = arith.mulf %14, %14 : vector<8x32xf32>
    %cst_10 = arith.constant dense<0.000000e+00> : vector<8xf32>
    %16 = vector.multi_reduction <add>, %15, %cst_10 [1] : vector<8x32xf32> to vector<8xf32>
    %17 = vector.shape_cast %16 : vector<8xf32> to vector<8x1xf32>
    %cst_11 = arith.constant 3.200000e+01 : f32
    %18 = vector.broadcast %cst_11 : f32 to vector<8x1xf32>
    %19 = arith.divf %17, %18 : vector<8x1xf32>
    %cst_12 = arith.constant 9.99999974E-6 : f32
    %20 = vector.broadcast %cst_12 : f32 to vector<8x1xf32>
    %21 = arith.addf %19, %20 : vector<8x1xf32>
    %22 = math.rsqrt %21 : vector<8x1xf32>
    %23 = vector.broadcast %22 : vector<8x1xf32> to vector<8x32xf32>
    %24 = arith.mulf %14, %23 : vector<8x32xf32>
    %25 = vector.broadcast %6 : vector<1x32xf32> to vector<8x32xf32>
    %26 = arith.mulf %24, %25 : vector<8x32xf32>
    %27 = vector.broadcast %8 : vector<1x32xf32> to vector<8x32xf32>
    %28 = arith.addf %26, %27 : vector<8x32xf32>
    %29 = arith.truncf %28 : vector<8x32xf32> to vector<8x32xbf16>
    %c0_13 = arith.constant 0 : index
    %c0_14 = arith.constant 0 : index
    %c0_15 = arith.constant 0 : index
    %c0_16 = arith.constant 0 : index
    %30 = vector.load %arg4[%c0_13, %c0_14, %c0_15, %c0_16] : memref<1x4x8x8xbf16, #tpu.memory_space<vmem>>, vector<1x4x8x8xbf16>
    %31 = vector.shape_cast %30 : vector<1x4x8x8xbf16> to vector<4x8x8xbf16>
    %c0_17 = arith.constant 0 : index
    %c0_18 = arith.constant 0 : index
    %c0_19 = arith.constant 0 : index
    %32 = vector.load %arg7[%c0_17, %c0_18, %c0_19] : memref<1x32x32xbf16, #tpu.memory_space<vmem>>, vector<1x32x32xbf16>
    %33 = vector.shape_cast %32 : vector<1x32x32xbf16> to vector<32x32xbf16>
    %cst_20 = arith.constant 0.000000e+00 : f32
    %34 = vector.broadcast %cst_20 : f32 to vector<8x32xf32>
    %35 = vector.extract_strided_slice %31 {offsets = [0, 0, 0], sizes = [1, 8, 8], strides = [1, 1, 1]} : vector<4x8x8xbf16> to vector<1x8x8xbf16>
    %36 = vector.shape_cast %35 : vector<1x8x8xbf16> to vector<8x8xbf16>
    %37 = vector.extract_strided_slice %29 {offsets = [0, 0], sizes = [8, 8], strides = [1, 1]} : vector<8x32xbf16> to vector<8x8xbf16>
    %cst_21 = arith.constant dense<0.000000e+00> : vector<8x8xf32>
    %38 = tpu.matmul %36, %37, %cst_21 {dimension_numbers = #tpu.dot_dimension_numbers<[1], [0], [0], [1], [0, 0, 1, 1], [], []>} : vector<8x8xbf16>, vector<8x8xbf16>, vector<8x8xf32> -> vector<8x8xf32>
    %39 = arith.truncf %38 : vector<8x8xf32> to vector<8x8xbf16>
    %40 = vector.extract_strided_slice %33 {offsets = [0, 0], sizes = [8, 32], strides = [1, 1]} : vector<32x32xbf16> to vector<8x32xbf16>
    %cst_22 = arith.constant dense<0.000000e+00> : vector<8x32xf32>
    %41 = tpu.matmul %39, %40, %cst_22 {dimension_numbers = #tpu.dot_dimension_numbers<[1], [0], [0], [1], [0, 0, 1, 1], [], []>} : vector<8x8xbf16>, vector<8x32xbf16>, vector<8x32xf32> -> vector<8x32xf32>
    %42 = arith.addf %34, %41 : vector<8x32xf32>
    %43 = vector.extract_strided_slice %31 {offsets = [1, 0, 0], sizes = [1, 8, 8], strides = [1, 1, 1]} : vector<4x8x8xbf16> to vector<1x8x8xbf16>
    %44 = vector.shape_cast %43 : vector<1x8x8xbf16> to vector<8x8xbf16>
    %45 = vector.extract_strided_slice %29 {offsets = [0, 8], sizes = [8, 8], strides = [1, 1]} : vector<8x32xbf16> to vector<8x8xbf16>
    %cst_23 = arith.constant dense<0.000000e+00> : vector<8x8xf32>
    %46 = tpu.matmul %44, %45, %cst_23 {dimension_numbers = #tpu.dot_dimension_numbers<[1], [0], [0], [1], [0, 0, 1, 1], [], []>} : vector<8x8xbf16>, vector<8x8xbf16>, vector<8x8xf32> -> vector<8x8xf32>
    %47 = arith.truncf %46 : vector<8x8xf32> to vector<8x8xbf16>
    %48 = vector.extract_strided_slice %33 {offsets = [8, 0], sizes = [8, 32], strides = [1, 1]} : vector<32x32xbf16> to vector<8x32xbf16>
    %cst_24 = arith.constant dense<0.000000e+00> : vector<8x32xf32>
    %49 = tpu.matmul %47, %48, %cst_24 {dimension_numbers = #tpu.dot_dimension_numbers<[1], [0], [0], [1], [0, 0, 1, 1], [], []>} : vector<8x8xbf16>, vector<8x32xbf16>, vector<8x32xf32> -> vector<8x32xf32>
    %50 = arith.addf %42, %49 : vector<8x32xf32>
    %51 = vector.extract_strided_slice %31 {offsets = [2, 0, 0], sizes = [1, 8, 8], strides = [1, 1, 1]} : vector<4x8x8xbf16> to vector<1x8x8xbf16>
    %52 = vector.shape_cast %51 : vector<1x8x8xbf16> to vector<8x8xbf16>
    %53 = vector.extract_strided_slice %29 {offsets = [0, 16], sizes = [8, 8], strides = [1, 1]} : vector<8x32xbf16> to vector<8x8xbf16>
    %cst_25 = arith.constant dense<0.000000e+00> : vector<8x8xf32>
    %54 = tpu.matmul %52, %53, %cst_25 {dimension_numbers = #tpu.dot_dimension_numbers<[1], [0], [0], [1], [0, 0, 1, 1], [], []>} : vector<8x8xbf16>, vector<8x8xbf16>, vector<8x8xf32> -> vector<8x8xf32>
    %55 = arith.truncf %54 : vector<8x8xf32> to vector<8x8xbf16>
    %56 = vector.extract_strided_slice %33 {offsets = [16, 0], sizes = [8, 32], strides = [1, 1]} : vector<32x32xbf16> to vector<8x32xbf16>
    %cst_26 = arith.constant dense<0.000000e+00> : vector<8x32xf32>
    %57 = tpu.matmul %55, %56, %cst_26 {dimension_numbers = #tpu.dot_dimension_numbers<[1], [0], [0], [1], [0, 0, 1, 1], [], []>} : vector<8x8xbf16>, vector<8x32xbf16>, vector<8x32xf32> -> vector<8x32xf32>
    %58 = arith.addf %50, %57 : vector<8x32xf32>
    %59 = vector.extract_strided_slice %31 {offsets = [3, 0, 0], sizes = [1, 8, 8], strides = [1, 1, 1]} : vector<4x8x8xbf16> to vector<1x8x8xbf16>
    %60 = vector.shape_cast %59 : vector<1x8x8xbf16> to vector<8x8xbf16>
    %61 = vector.extract_strided_slice %29 {offsets = [0, 24], sizes = [8, 8], strides = [1, 1]} : vector<8x32xbf16> to vector<8x8xbf16>
    %cst_27 = arith.constant dense<0.000000e+00> : vector<8x8xf32>
    %62 = tpu.matmul %60, %61, %cst_27 {dimension_numbers = #tpu.dot_dimension_numbers<[1], [0], [0], [1], [0, 0, 1, 1], [], []>} : vector<8x8xbf16>, vector<8x8xbf16>, vector<8x8xf32> -> vector<8x8xf32>
    %63 = arith.truncf %62 : vector<8x8xf32> to vector<8x8xbf16>
    %64 = vector.extract_strided_slice %33 {offsets = [24, 0], sizes = [8, 32], strides = [1, 1]} : vector<32x32xbf16> to vector<8x32xbf16>
    %cst_28 = arith.constant dense<0.000000e+00> : vector<8x32xf32>
    %65 = tpu.matmul %63, %64, %cst_28 {dimension_numbers = #tpu.dot_dimension_numbers<[1], [0], [0], [1], [0, 0, 1, 1], [], []>} : vector<8x8xbf16>, vector<8x32xbf16>, vector<8x32xf32> -> vector<8x32xf32>
    %66 = arith.addf %58, %65 : vector<8x32xf32>
    %67 = arith.addf %4, %66 : vector<8x32xf32>
    %c0_29 = arith.constant 0 : index
    %c0_30 = arith.constant 0 : index
    %c0_31 = arith.constant 0 : index
    %68 = vector.load %arg8[%c0_29, %c0_30, %c0_31] : memref<1x1x32xf32, #tpu.memory_space<vmem>>, vector<1x1x32xf32>
    %69 = vector.shape_cast %68 : vector<1x1x32xf32> to vector<1x32xf32>
    %70 = vector.broadcast %69 : vector<1x32xf32> to vector<8x32xf32>
    %71 = arith.addf %67, %70 : vector<8x32xf32>
    %c0_32 = arith.constant 0 : index
    %c0_33 = arith.constant 0 : index
    %c0_34 = arith.constant 0 : index
    %72 = vector.load %arg9[%c0_32, %c0_33, %c0_34] : memref<1x1x32xf32, #tpu.memory_space<vmem>>, vector<1x1x32xf32>
    %73 = vector.shape_cast %72 : vector<1x1x32xf32> to vector<1x32xf32>
    %c0_35 = arith.constant 0 : index
    %c0_36 = arith.constant 0 : index
    %c0_37 = arith.constant 0 : index
    %74 = vector.load %arg10[%c0_35, %c0_36, %c0_37] : memref<1x1x32xf32, #tpu.memory_space<vmem>>, vector<1x1x32xf32>
    %75 = vector.shape_cast %74 : vector<1x1x32xf32> to vector<1x32xf32>
    %cst_38 = arith.constant dense<0.000000e+00> : vector<8xf32>
    %76 = vector.multi_reduction <add>, %71, %cst_38 [1] : vector<8x32xf32> to vector<8xf32>
    %77 = vector.shape_cast %76 : vector<8xf32> to vector<8x1xf32>
    %cst_39 = arith.constant 3.200000e+01 : f32
    %78 = vector.broadcast %cst_39 : f32 to vector<8x1xf32>
    %79 = arith.divf %77, %78 : vector<8x1xf32>
    %80 = vector.broadcast %79 : vector<8x1xf32> to vector<8x32xf32>
    %81 = arith.subf %71, %80 : vector<8x32xf32>
    %82 = arith.mulf %81, %81 : vector<8x32xf32>
    %cst_40 = arith.constant dense<0.000000e+00> : vector<8xf32>
    %83 = vector.multi_reduction <add>, %82, %cst_40 [1] : vector<8x32xf32> to vector<8xf32>
    %84 = vector.shape_cast %83 : vector<8xf32> to vector<8x1xf32>
    %cst_41 = arith.constant 3.200000e+01 : f32
    %85 = vector.broadcast %cst_41 : f32 to vector<8x1xf32>
    %86 = arith.divf %84, %85 : vector<8x1xf32>
    %cst_42 = arith.constant 9.99999974E-6 : f32
    %87 = vector.broadcast %cst_42 : f32 to vector<8x1xf32>
    %88 = arith.addf %86, %87 : vector<8x1xf32>
    %89 = math.rsqrt %88 : vector<8x1xf32>
    %90 = vector.broadcast %89 : vector<8x1xf32> to vector<8x32xf32>
    %91 = arith.mulf %81, %90 : vector<8x32xf32>
    %92 = vector.broadcast %73 : vector<1x32xf32> to vector<8x32xf32>
    %93 = arith.mulf %91, %92 : vector<8x32xf32>
    %94 = vector.broadcast %75 : vector<1x32xf32> to vector<8x32xf32>
    %95 = arith.addf %93, %94 : vector<8x32xf32>
    %96 = arith.truncf %95 : vector<8x32xf32> to vector<8x32xbf16>
    %c0_43 = arith.constant 0 : index
    %c0_44 = arith.constant 0 : index
    %c0_45 = arith.constant 0 : index
    %97 = vector.load %arg11[%c0_43, %c0_44, %c0_45] : memref<1x32x64xbf16, #tpu.memory_space<vmem>>, vector<1x32x64xbf16>
    %98 = vector.shape_cast %97 : vector<1x32x64xbf16> to vector<32x64xbf16>
    %cst_46 = arith.constant dense<0.000000e+00> : vector<8x64xf32>
    %99 = tpu.matmul %96, %98, %cst_46 {dimension_numbers = #tpu.dot_dimension_numbers<[1], [0], [0], [1], [0, 0, 1, 1], [], []>} : vector<8x32xbf16>, vector<32x64xbf16>, vector<8x64xf32> -> vector<8x64xf32>
    %c0_47 = arith.constant 0 : index
    %c0_48 = arith.constant 0 : index
    %c0_49 = arith.constant 0 : index
    %100 = vector.load %arg12[%c0_47, %c0_48, %c0_49] : memref<1x1x64xf32, #tpu.memory_space<vmem>>, vector<1x1x64xf32>
    %101 = vector.shape_cast %100 : vector<1x1x64xf32> to vector<1x64xf32>
    %102 = vector.broadcast %101 : vector<1x64xf32> to vector<8x64xf32>
    %103 = arith.addf %99, %102 : vector<8x64xf32>
    %cst_50 = arith.constant 5.000000e-01 : f32
    %104 = vector.broadcast %cst_50 : f32 to vector<8x64xf32>
    %105 = arith.mulf %104, %103 : vector<8x64xf32>
    %cst_51 = arith.constant 0.707106769 : f32
    %106 = vector.broadcast %cst_51 : f32 to vector<8x64xf32>
    %107 = arith.mulf %103, %106 : vector<8x64xf32>
    %108 = math.erf %107 : vector<8x64xf32>
    %cst_52 = arith.constant 1.000000e+00 : f32
    %109 = vector.broadcast %cst_52 : f32 to vector<8x64xf32>
    %110 = arith.addf %109, %108 : vector<8x64xf32>
    %111 = arith.mulf %105, %110 : vector<8x64xf32>
    %112 = arith.truncf %111 : vector<8x64xf32> to vector<8x64xbf16>
    %c0_53 = arith.constant 0 : index
    %c0_54 = arith.constant 0 : index
    %c0_55 = arith.constant 0 : index
    %113 = vector.load %arg13[%c0_53, %c0_54, %c0_55] : memref<1x64x32xbf16, #tpu.memory_space<vmem>>, vector<1x64x32xbf16>
    %114 = vector.shape_cast %113 : vector<1x64x32xbf16> to vector<64x32xbf16>
    %cst_56 = arith.constant dense<0.000000e+00> : vector<8x32xf32>
    %115 = tpu.matmul %112, %114, %cst_56 {dimension_numbers = #tpu.dot_dimension_numbers<[1], [0], [0], [1], [0, 0, 1, 1], [], []>} : vector<8x64xbf16>, vector<64x32xbf16>, vector<8x32xf32> -> vector<8x32xf32>
    %c0_57 = arith.constant 0 : index
    %c0_58 = arith.constant 0 : index
    %c0_59 = arith.constant 0 : index
    %116 = vector.load %arg14[%c0_57, %c0_58, %c0_59] : memref<1x1x32xf32, #tpu.memory_space<vmem>>, vector<1x1x32xf32>
    %117 = vector.shape_cast %116 : vector<1x1x32xf32> to vector<1x32xf32>
    %118 = vector.broadcast %117 : vector<1x32xf32> to vector<8x32xf32>
    %119 = arith.addf %115, %118 : vector<8x32xf32>
    %120 = arith.addf %71, %119 : vector<8x32xf32>
    %cst_60 = arith.constant dense<0.000000e+00> : vector<32xf32>
    %121 = vector.multi_reduction <add>, %120, %cst_60 [0] : vector<8x32xf32> to vector<32xf32>
    %122 = vector.shape_cast %121 : vector<32xf32> to vector<1x32xf32>
    %cst_61 = arith.constant 8.000000e+00 : f32
    %123 = vector.broadcast %cst_61 : f32 to vector<1x32xf32>
    %124 = arith.divf %122, %123 : vector<1x32xf32>
    %c0_62 = arith.constant 0 : index
    %c0_63 = arith.constant 0 : index
    %c0_64 = arith.constant 0 : index
    %125 = vector.load %arg18[%c0_62, %c0_63, %c0_64] : memref<1x1x32xf32, #tpu.memory_space<vmem>>, vector<1x1x32xf32>
    %126 = vector.shape_cast %125 : vector<1x1x32xf32> to vector<1x32xf32>
    %127 = arith.addf %124, %126 : vector<1x32xf32>
    %c0_65 = arith.constant 0 : index
    %c0_66 = arith.constant 0 : index
    %128 = vector.load %arg15[%c0_65, %c0_66] : memref<1x32xf32, #tpu.memory_space<vmem>>, vector<1x32xf32>
    %129 = vector.shape_cast %128 : vector<1x32xf32> to vector<32xf32>
    %c0_67 = arith.constant 0 : index
    %c0_68 = arith.constant 0 : index
    %130 = vector.load %arg16[%c0_67, %c0_68] : memref<1x32xf32, #tpu.memory_space<vmem>>, vector<1x32xf32>
    %131 = vector.shape_cast %130 : vector<1x32xf32> to vector<32xf32>
    %cst_69 = arith.constant dense<0.000000e+00> : vector<1xf32>
    %132 = vector.multi_reduction <add>, %127, %cst_69 [1] : vector<1x32xf32> to vector<1xf32>
    %133 = vector.shape_cast %132 : vector<1xf32> to vector<1x1xf32>
    %cst_70 = arith.constant 3.200000e+01 : f32
    %134 = vector.broadcast %cst_70 : f32 to vector<1x1xf32>
    %135 = arith.divf %133, %134 : vector<1x1xf32>
    %136 = vector.broadcast %135 : vector<1x1xf32> to vector<1x32xf32>
    %137 = arith.subf %127, %136 : vector<1x32xf32>
    %138 = arith.mulf %137, %137 : vector<1x32xf32>
    %cst_71 = arith.constant dense<0.000000e+00> : vector<1xf32>
    %139 = vector.multi_reduction <add>, %138, %cst_71 [1] : vector<1x32xf32> to vector<1xf32>
    %140 = vector.shape_cast %139 : vector<1xf32> to vector<1x1xf32>
    %cst_72 = arith.constant 3.200000e+01 : f32
    %141 = vector.broadcast %cst_72 : f32 to vector<1x1xf32>
    %142 = arith.divf %140, %141 : vector<1x1xf32>
    %cst_73 = arith.constant 9.99999974E-6 : f32
    %143 = vector.broadcast %cst_73 : f32 to vector<1x1xf32>
    %144 = arith.addf %142, %143 : vector<1x1xf32>
    %145 = math.rsqrt %144 : vector<1x1xf32>
    %146 = vector.broadcast %145 : vector<1x1xf32> to vector<1x32xf32>
    %147 = arith.mulf %137, %146 : vector<1x32xf32>
    %148 = vector.shape_cast %129 : vector<32xf32> to vector<1x32xf32>
    %149 = arith.mulf %147, %148 : vector<1x32xf32>
    %150 = vector.shape_cast %131 : vector<32xf32> to vector<1x32xf32>
    %151 = arith.addf %149, %150 : vector<1x32xf32>
    %c0_74 = arith.constant 0 : index
    %c0_75 = arith.constant 0 : index
    %c0_76 = arith.constant 0 : index
    %152 = vector.load %arg18[%c0_74, %c0_75, %c0_76] : memref<1x1x32xf32, #tpu.memory_space<vmem>>, vector<1x1x32xf32>
    %153 = vector.shape_cast %152 : vector<1x1x32xf32> to vector<1x32xf32>
    %154 = vector.shape_cast %151 : vector<1x32xf32> to vector<1x1x32xf32>
    tpu.vector_store %arg18[%c0_74, %c0_75, %c0_76], %154 {strides = array<i32>} : memref<1x1x32xf32, #tpu.memory_space<vmem>>, vector<1x1x32xf32>,
    %c0_77 = arith.constant 0 : index
    %c0_78 = arith.constant 0 : index
    %c0_79 = arith.constant 0 : index
    %155 = vector.load %arg17[%c0_77, %c0_78, %c0_79] : memref<1x8x32xf32, #tpu.memory_space<vmem>>, vector<1x8x32xf32>
    %156 = vector.shape_cast %155 : vector<1x8x32xf32> to vector<8x32xf32>
    %157 = vector.shape_cast %120 : vector<8x32xf32> to vector<1x8x32xf32>
    tpu.vector_store %arg17[%c0_77, %c0_78, %c0_79], %157 {strides = array<i32>} : memref<1x8x32xf32, #tpu.memory_space<vmem>>, vector<1x8x32xf32>,
    return
  }
  func.func @transform_0(%arg0: i32, %arg1: i32) -> (i32, i32, i32) {
    %c0_i32 = arith.constant 0 : i32
    %c0_i32_0 = arith.constant 0 : i32
    %c0_i32_1 = arith.constant 0 : i32
    return %arg0, %c0_i32, %c0_i32_0 : i32, i32, i32
  }
  func.func @transform_1(%arg0: i32, %arg1: i32) -> (i32, i32, i32) {
    %c0_i32 = arith.constant 0 : i32
    %c0_i32_0 = arith.constant 0 : i32
    %c0_i32_1 = arith.constant 0 : i32
    return %arg0, %c0_i32, %c0_i32_0 : i32, i32, i32
  }
  func.func @transform_2(%arg0: i32, %arg1: i32) -> (i32, i32, i32, i32) {
    %c0_i32 = arith.constant 0 : i32
    %c0_i32_0 = arith.constant 0 : i32
    %c0_i32_1 = arith.constant 0 : i32
    %c0_i32_2 = arith.constant 0 : i32
    return %arg1, %c0_i32, %c0_i32_0, %c0_i32_1 : i32, i32, i32, i32
  }
  func.func @transform_3(%arg0: i32, %arg1: i32) -> (i32, i32, i32) {
    %c0_i32 = arith.constant 0 : i32
    %c0_i32_0 = arith.constant 0 : i32
    %c0_i32_1 = arith.constant 0 : i32
    return %arg1, %c0_i32, %c0_i32_0 : i32, i32, i32
  }
  func.func @transform_4(%arg0: i32, %arg1: i32) -> (i32, i32, i32) {
    %c0_i32 = arith.constant 0 : i32
    %c0_i32_0 = arith.constant 0 : i32
    %c0_i32_1 = arith.constant 0 : i32
    return %arg1, %c0_i32, %c0_i32_0 : i32, i32, i32
  }
  func.func @transform_5(%arg0: i32, %arg1: i32) -> (i32, i32, i32) {
    %c0_i32 = arith.constant 0 : i32
    %c0_i32_0 = arith.constant 0 : i32
    %c0_i32_1 = arith.constant 0 : i32
    return %arg1, %c0_i32, %c0_i32_0 : i32, i32, i32
  }
  func.func @transform_6(%arg0: i32, %arg1: i32) -> (i32, i32, i32) {
    %c0_i32 = arith.constant 0 : i32
    %c0_i32_0 = arith.constant 0 : i32
    %c0_i32_1 = arith.constant 0 : i32
    return %arg1, %c0_i32, %c0_i32_0 : i32, i32, i32
  }
  func.func @transform_7(%arg0: i32, %arg1: i32) -> (i32, i32, i32) {
    %c0_i32 = arith.constant 0 : i32
    %c0_i32_0 = arith.constant 0 : i32
    %c0_i32_1 = arith.constant 0 : i32
    return %arg1, %c0_i32, %c0_i32_0 : i32, i32, i32
  }
  func.func @transform_8(%arg0: i32, %arg1: i32) -> (i32, i32, i32) {
    %c0_i32 = arith.constant 0 : i32
    %c0_i32_0 = arith.constant 0 : i32
    %c0_i32_1 = arith.constant 0 : i32
    return %arg1, %c0_i32, %c0_i32_0 : i32, i32, i32
  }
  func.func @transform_9(%arg0: i32, %arg1: i32) -> (i32, i32, i32) {
    %c0_i32 = arith.constant 0 : i32
    %c0_i32_0 = arith.constant 0 : i32
    %c0_i32_1 = arith.constant 0 : i32
    return %arg1, %c0_i32, %c0_i32_0 : i32, i32, i32
  }
  func.func @transform_10(%arg0: i32, %arg1: i32) -> (i32, i32, i32) {
    %c0_i32 = arith.constant 0 : i32
    %c0_i32_0 = arith.constant 0 : i32
    %c0_i32_1 = arith.constant 0 : i32
    return %arg1, %c0_i32, %c0_i32_0 : i32, i32, i32
  }
  func.func @transform_11(%arg0: i32, %arg1: i32) -> (i32, i32, i32) {
    %c0_i32 = arith.constant 0 : i32
    %c0_i32_0 = arith.constant 0 : i32
    %c0_i32_1 = arith.constant 0 : i32
    return %arg1, %c0_i32, %c0_i32_0 : i32, i32, i32
  }
  func.func @transform_12(%arg0: i32, %arg1: i32) -> (i32, i32, i32) {
    %c0_i32 = arith.constant 0 : i32
    %c0_i32_0 = arith.constant 0 : i32
    %c0_i32_1 = arith.constant 0 : i32
    return %arg1, %c0_i32, %c0_i32_0 : i32, i32, i32
  }
  func.func @transform_13(%arg0: i32, %arg1: i32) -> (i32, i32) {
    %c0_i32 = arith.constant 0 : i32
    %c0_i32_0 = arith.constant 0 : i32
    %c0_i32_1 = arith.constant 0 : i32
    return %c0_i32, %c0_i32_0 : i32, i32
  }
  func.func @transform_14(%arg0: i32, %arg1: i32) -> (i32, i32) {
    %c0_i32 = arith.constant 0 : i32
    %c0_i32_0 = arith.constant 0 : i32
    %c0_i32_1 = arith.constant 0 : i32
    return %c0_i32, %c0_i32_0 : i32, i32
  }
  func.func @transform_15(%arg0: i32, %arg1: i32) -> (i32, i32, i32) {
    %c0_i32 = arith.constant 0 : i32
    %c0_i32_0 = arith.constant 0 : i32
    %c0_i32_1 = arith.constant 0 : i32
    return %arg0, %c0_i32, %c0_i32_0 : i32, i32, i32
  }
  func.func @transform_16(%arg0: i32, %arg1: i32) -> (i32, i32, i32) {
    %c0_i32 = arith.constant 0 : i32
    %c0_i32_0 = arith.constant 0 : i32
    %c0_i32_1 = arith.constant 0 : i32
    return %arg0, %c0_i32, %c0_i32_0 : i32, i32, i32
  }
}

</mosaic_0001>

<llo_original>
// kernel: flashformer_forward.1
$region0: #{flashformer_forward.1}
  #allocation0 [shape = 'u32[]', space=smem, size = 0x4, offset = 0x4, fixed_abs, tag = 'smem constant byte address 0x4 - core index']
  #allocation1 [shape = 'u32[144,128]{1,0:T(1,128)}', space=vmem, size = 0x12000, scoped, tag = 'internal scratch']
  %s0 = inlined_call_operand.vmem [shape: f32[2,8,32], index: 0, kind: input, shape index: {}]
  %s1 = inlined_call_operand.vmem [shape: f32[2,1,32], index: 1, kind: input, shape index: {}]
  %s2 = inlined_call_operand.vmem [shape: bf16[2,4,8,8], index: 2, kind: input, shape index: {}]
  %s3 = inlined_call_operand.vmem [shape: f32[2,1,32], index: 3, kind: input, shape index: {}]
  %s4 = inlined_call_operand.vmem [shape: f32[2,1,32], index: 4, kind: input, shape index: {}]
  %s5 = inlined_call_operand.vmem [shape: bf16[2,32,32], index: 5, kind: input, shape index: {}]
  %s6 = inlined_call_operand.vmem [shape: f32[2,1,32], index: 6, kind: input, shape index: {}]
  %s7 = inlined_call_operand.vmem [shape: f32[2,1,32], index: 7, kind: input, shape index: {}]
  %s8 = inlined_call_operand.vmem [shape: f32[2,1,32], index: 8, kind: input, shape index: {}]
  %s9 = inlined_call_operand.vmem [shape: bf16[2,32,64], index: 9, kind: input, shape index: {}]
  %s10 = inlined_call_operand.vmem [shape: f32[2,1,64], index: 10, kind: input, shape index: {}]
  %s11 = inlined_call_operand.vmem [shape: bf16[2,64,32], index: 11, kind: input, shape index: {}]
  %s12 = inlined_call_operand.vmem [shape: f32[2,1,32], index: 12, kind: input, shape index: {}]
  %s13 = inlined_call_operand.vmem [shape: f32[1,32], index: 13, kind: input, shape index: {}]
  %s14 = inlined_call_operand.vmem [shape: f32[1,32], index: 14, kind: input, shape index: {}]
  %s15 = inlined_call_operand.vmem [shape: f32[2,8,32], index: 15, kind: output, shape index: {0}]
  %s16 = inlined_call_operand.vmem [shape: f32[2,1,32], index: 16, kind: output, shape index: {1}]
  %17 = xla_tuple %s15, %s16
  %s18 = sld [smem:[#allocation0]]
  $region105: #{flashformer_forward.1} parent=0
    _
  %s20 = ssub.s32 1, %s18
  %s21 = scalar_select 0, %s20, %s18
  loop: start=0, step=1, limit=6
  $region2: #{flashformer_forward.1} parent=0 // loop_pre_header
    _
  $region3: #{flashformer_forward.1} parent=0 // loop_header
    %s23 = sphi 0, %s27
    %p24 = scmp.ge.s32.totalorder %s23, 6
    %s30 = sphi 0, %s42
    %s31 = sphi 0, %s38
    %s32 = sphi 0, %s30
    %s33 = sphi 0, %s31
    %s34 = sphi 0, %s32
    %s35 = sphi 0, %s33
    %s45 = sphi 0, %s47
    %s48 = sphi 0, %s45
    %s49 = sphi 0, %s48
    %s65 = sphi 0, %s49
    %s71 = sphi 0, %s73
    %s74 = sphi 0, %s71
    %s75 = sphi 0, %s74
    %s91 = sphi 0, %s75
    %s97 = sphi 0, %s99
    %s100 = sphi 0, %s97
    %s101 = sphi 0, %s100
    %s117 = sphi 0, %s101
    %s123 = sphi 0, %s125
    %s126 = sphi 0, %s123
    %s127 = sphi 0, %s126
    %s143 = sphi 0, %s127
    %s149 = sphi 0, %s151
    %s152 = sphi 0, %s149
    %s153 = sphi 0, %s152
    %s169 = sphi 0, %s153
    %s175 = sphi 0, %s177
    %s178 = sphi 0, %s175
    %s179 = sphi 0, %s178
    %s195 = sphi 0, %s179
    %s201 = sphi 0, %s203
    %s204 = sphi 0, %s201
    %s205 = sphi 0, %s204
    %s221 = sphi 0, %s205
    %s227 = sphi 0, %s229
    %s230 = sphi 0, %s227
    %s231 = sphi 0, %s230
    %s247 = sphi 0, %s231
    %s253 = sphi 0, %s255
    %s256 = sphi 0, %s253
    %s257 = sphi 0, %s256
    %s273 = sphi 0, %s257
    %s279 = sphi 0, %s281
    %s282 = sphi 0, %s279
    %s283 = sphi 0, %s282
    %s299 = sphi 0, %s283
    %s305 = sphi 0, %s307
    %s308 = sphi 0, %s305
    %s309 = sphi 0, %s308
    %s325 = sphi 0, %s309
    %s331 = sphi 0, %s333
    %s334 = sphi 0, %s331
    %s335 = sphi 0, %s334
    %s351 = sphi 0, %s335
    %s357 = sphi 0, %s359
    %s360 = sphi 0, %s357
    %s361 = sphi 0, %s360
    %s377 = sphi 0, %s361
    %s381 = sphi 0, %s381
    %s383 = sphi 0, %s381
    %s384 = sphi 0, %s383
    %s398 = sphi 0, %s384
    %s402 = sphi 0, %s402
    %s404 = sphi 0, %s402
    %s405 = sphi 0, %s404
    %s419 = sphi 0, %s405
    %s425 = sphi 0, %s427
    %s428 = sphi 0, %s425
    %s429 = sphi 0, %s428
    %s445 = sphi 0, %s429
    %s451 = sphi 0, %s453
    %s454 = sphi 0, %s451
    %s455 = sphi 0, %s454
    %s471 = sphi 0, %s455
  $region4: #{flashformer_forward.1} parent=0 // loop_header_branch
    %26 = sbr.rel (%p24) target = $region8
  $region5: #{flashformer_forward.1} parent=0 // loop_body
    %s28 = ssub.s32 %s23, 1
    %s29 = ssub.s32 %s23, 2
    %s36 = sadd.s32 1, %s31
    %p37 = scmp.ge.s32.totalorder %s36, 2
    %s38 = scalar_select %p37, 0, %s36
    %s39 = sadd.s32 1, %s30
    %s40 = scalar_select %p37, %s39, %s30
    %p41 = scmp.ge.s32.totalorder %s40, 2
    %s42 = scalar_select %p41, 0, %s40
    %s43 = ssub.s32 %s30, %s42
    %p44 = scmp.eq.s32.totalorder %s43, 0
    %s46 = sadd.s32 %s45, 1
    %s47 = scalar_select %p44, %s45, %s46
    %p50 = pneg %p44
    %p51 = scmp.eq.s32.totalorder %s23, 3
    %p52 = por %p50, %p51
    %p53 = scmp.ne.s32.totalorder %s45, %s48
    %p54 = scmp.eq.s32.totalorder %s23, 0
    %p55 = por %p53, %p54
    %p56 = scmp.ne.s32.totalorder %s45, %s48
    %p57 = scmp.eq.s32.totalorder %s28, 3
    %p58 = por %p56, %p57
    %p59 = scmp.ne.s32.totalorder %s48, %s49
    %p60 = scmp.eq.s32.totalorder %s28, 0
    %p61 = por %p59, %p60
    %p62 = scmp.ne.s32.totalorder %s48, %s49
    %p63 = scmp.eq.s32.totalorder %s29, 3
    %p64 = por %p62, %p63
    %p66 = scmp.ne.s32.totalorder %s49, %s65
    %p67 = scmp.eq.s32.totalorder %s29, 0
    %p68 = por %p66, %p67
    %s69 = ssub.s32 %s30, %s42
    %p70 = scmp.eq.s32.totalorder %s69, 0
    %s72 = sadd.s32 %s71, 1
    %s73 = scalar_select %p70, %s71, %s72
    %p76 = pneg %p70
    %p77 = scmp.eq.s32.totalorder %s23, 3
    %p78 = por %p76, %p77
    %p79 = scmp.ne.s32.totalorder %s71, %s74
    %p80 = scmp.eq.s32.totalorder %s23, 0
    %p81 = por %p79, %p80
    %p82 = scmp.ne.s32.totalorder %s71, %s74
    %p83 = scmp.eq.s32.totalorder %s28, 3
    %p84 = por %p82, %p83
    %p85 = scmp.ne.s32.totalorder %s74, %s75
    %p86 = scmp.eq.s32.totalorder %s28, 0
    %p87 = por %p85, %p86
    %p88 = scmp.ne.s32.totalorder %s74, %s75
    %p89 = scmp.eq.s32.totalorder %s29, 3
    %p90 = por %p88, %p89
    %p92 = scmp.ne.s32.totalorder %s75, %s91
    %p93 = scmp.eq.s32.totalorder %s29, 0
    %p94 = por %p92, %p93
    %s95 = ssub.s32 %s31, %s38
    %p96 = scmp.eq.s32.totalorder %s95, 0
    %s98 = sadd.s32 %s97, 1
    %s99 = scalar_select %p96, %s97, %s98
    %p102 = pneg %p96
    %p103 = scmp.eq.s32.totalorder %s23, 3
    %p104 = por %p102, %p103
    %p105 = scmp.ne.s32.totalorder %s97, %s100
    %p106 = scmp.eq.s32.totalorder %s23, 0
    %p107 = por %p105, %p106
    %p108 = scmp.ne.s32.totalorder %s97, %s100
    %p109 = scmp.eq.s32.totalorder %s28, 3
    %p110 = por %p108, %p109
    %p111 = scmp.ne.s32.totalorder %s100, %s101
    %p112 = scmp.eq.s32.totalorder %s28, 0
    %p113 = por %p111, %p112
    %p114 = scmp.ne.s32.totalorder %s100, %s101
    %p115 = scmp.eq.s32.totalorder %s29, 3
    %p116 = por %p114, %p115
    %p118 = scmp.ne.s32.totalorder %s101, %s117
    %p119 = scmp.eq.s32.totalorder %s29, 0
    %p120 = por %p118, %p119
    %s121 = ssub.s32 %s31, %s38
    %p122 = scmp.eq.s32.totalorder %s121, 0
    %s124 = sadd.s32 %s123, 1
    %s125 = scalar_select %p122, %s123, %s124
    %p128 = pneg %p122
    %p129 = scmp.eq.s32.totalorder %s23, 3
    %p130 = por %p128, %p129
    %p131 = scmp.ne.s32.totalorder %s123, %s126
    %p132 = scmp.eq.s32.totalorder %s23, 0
    %p133 = por %p131, %p132
    %p134 = scmp.ne.s32.totalorder %s123, %s126
    %p135 = scmp.eq.s32.totalorder %s28, 3
    %p136 = por %p134, %p135
    %p137 = scmp.ne.s32.totalorder %s126, %s127
    %p138 = scmp.eq.s32.totalorder %s28, 0
    %p139 = por %p137, %p138
    %p140 = scmp.ne.s32.totalorder %s126, %s127
    %p141 = scmp.eq.s32.totalorder %s29, 3
    %p142 = por %p140, %p141
    %p144 = scmp.ne.s32.totalorder %s127, %s143
    %p145 = scmp.eq.s32.totalorder %s29, 0
    %p146 = por %p144, %p145
    %s147 = ssub.s32 %s31, %s38
    %p148 = scmp.eq.s32.totalorder %s147, 0
    %s150 = sadd.s32 %s149, 1
    %s151 = scalar_select %p148, %s149, %s150
    %p154 = pneg %p148
    %p155 = scmp.eq.s32.totalorder %s23, 3
    %p156 = por %p154, %p155
    %p157 = scmp.ne.s32.totalorder %s149, %s152
    %p158 = scmp.eq.s32.totalorder %s23, 0
    %p159 = por %p157, %p158
    %p160 = scmp.ne.s32.totalorder %s149, %s152
    %p161 = scmp.eq.s32.totalorder %s28, 3
    %p162 = por %p160, %p161
    %p163 = scmp.ne.s32.totalorder %s152, %s153
    %p164 = scmp.eq.s32.totalorder %s28, 0
    %p165 = por %p163, %p164
    %p166 = scmp.ne.s32.totalorder %s152, %s153
    %p167 = scmp.eq.s32.totalorder %s29, 3
    %p168 = por %p166, %p167
    %p170 = scmp.ne.s32.totalorder %s153, %s169
    %p171 = scmp.eq.s32.totalorder %s29, 0
    %p172 = por %p170, %p171
    %s173 = ssub.s32 %s31, %s38
    %p174 = scmp.eq.s32.totalorder %s173, 0
    %s176 = sadd.s32 %s175, 1
    %s177 = scalar_select %p174, %s175, %s176
    %p180 = pneg %p174
    %p181 = scmp.eq.s32.totalorder %s23, 3
    %p182 = por %p180, %p181
    %p183 = scmp.ne.s32.totalorder %s175, %s178
    %p184 = scmp.eq.s32.totalorder %s23, 0
    %p185 = por %p183, %p184
    %p186 = scmp.ne.s32.totalorder %s175, %s178
    %p187 = scmp.eq.s32.totalorder %s28, 3
    %p188 = por %p186, %p187
    %p189 = scmp.ne.s32.totalorder %s178, %s179
    %p190 = scmp.eq.s32.totalorder %s28, 0
    %p191 = por %p189, %p190
    %p192 = scmp.ne.s32.totalorder %s178, %s179
    %p193 = scmp.eq.s32.totalorder %s29, 3
    %p194 = por %p192, %p193
    %p196 = scmp.ne.s32.totalorder %s179, %s195
    %p197 = scmp.eq.s32.totalorder %s29, 0
    %p198 = por %p196, %p197
    %s199 = ssub.s32 %s31, %s38
    %p200 = scmp.eq.s32.totalorder %s199, 0
    %s202 = sadd.s32 %s201, 1
    %s203 = scalar_select %p200, %s201, %s202
    %p206 = pneg %p200
    %p207 = scmp.eq.s32.totalorder %s23, 3
    %p208 = por %p206, %p207
    %p209 = scmp.ne.s32.totalorder %s201, %s204
    %p210 = scmp.eq.s32.totalorder %s23, 0
    %p211 = por %p209, %p210
    %p212 = scmp.ne.s32.totalorder %s201, %s204
    %p213 = scmp.eq.s32.totalorder %s28, 3
    %p214 = por %p212, %p213
    %p215 = scmp.ne.s32.totalorder %s204, %s205
    %p216 = scmp.eq.s32.totalorder %s28, 0
    %p217 = por %p215, %p216
    %p218 = scmp.ne.s32.totalorder %s204, %s205
    %p219 = scmp.eq.s32.totalorder %s29, 3
    %p220 = por %p218, %p219
    %p222 = scmp.ne.s32.totalorder %s205, %s221
    %p223 = scmp.eq.s32.totalorder %s29, 0
    %p224 = por %p222, %p223
    %s225 = ssub.s32 %s31, %s38
    %p226 = scmp.eq.s32.totalorder %s225, 0
    %s228 = sadd.s32 %s227, 1
    %s229 = scalar_select %p226, %s227, %s228
    %p232 = pneg %p226
    %p233 = scmp.eq.s32.totalorder %s23, 3
    %p234 = por %p232, %p233
    %p235 = scmp.ne.s32.totalorder %s227, %s230
    %p236 = scmp.eq.s32.totalorder %s23, 0
    %p237 = por %p235, %p236
    %p238 = scmp.ne.s32.totalorder %s227, %s230
    %p239 = scmp.eq.s32.totalorder %s28, 3
    %p240 = por %p238, %p239
    %p241 = scmp.ne.s32.totalorder %s230, %s231
    %p242 = scmp.eq.s32.totalorder %s28, 0
    %p243 = por %p241, %p242
    %p244 = scmp.ne.s32.totalorder %s230, %s231
    %p245 = scmp.eq.s32.totalorder %s29, 3
    %p246 = por %p244, %p245
    %p248 = scmp.ne.s32.totalorder %s231, %s247
    %p249 = scmp.eq.s32.totalorder %s29, 0
    %p250 = por %p248, %p249
    %s251 = ssub.s32 %s31, %s38
    %p252 = scmp.eq.s32.totalorder %s251, 0
    %s254 = sadd.s32 %s253, 1
    %s255 = scalar_select %p252, %s253, %s254
    %p258 = pneg %p252
    %p259 = scmp.eq.s32.totalorder %s23, 3
    %p260 = por %p258, %p259
    %p261 = scmp.ne.s32.totalorder %s253, %s256
    %p262 = scmp.eq.s32.totalorder %s23, 0
    %p263 = por %p261, %p262
    %p264 = scmp.ne.s32.totalorder %s253, %s256
    %p265 = scmp.eq.s32.totalorder %s28, 3
    %p266 = por %p264, %p265
    %p267 = scmp.ne.s32.totalorder %s256, %s257
    %p268 = scmp.eq.s32.totalorder %s28, 0
    %p269 = por %p267, %p268
    %p270 = scmp.ne.s32.totalorder %s256, %s257
    %p271 = scmp.eq.s32.totalorder %s29, 3
    %p272 = por %p270, %p271
    %p274 = scmp.ne.s32.totalorder %s257, %s273
    %p275 = scmp.eq.s32.totalorder %s29, 0
    %p276 = por %p274, %p275
    %s277 = ssub.s32 %s31, %s38
    %p278 = scmp.eq.s32.totalorder %s277, 0
    %s280 = sadd.s32 %s279, 1
    %s281 = scalar_select %p278, %s279, %s280
    %p284 = pneg %p278
    %p285 = scmp.eq.s32.totalorder %s23, 3
    %p286 = por %p284, %p285
    %p287 = scmp.ne.s32.totalorder %s279, %s282
    %p288 = scmp.eq.s32.totalorder %s23, 0
    %p289 = por %p287, %p288
    %p290 = scmp.ne.s32.totalorder %s279, %s282
    %p291 = scmp.eq.s32.totalorder %s28, 3
    %p292 = por %p290, %p291
    %p293 = scmp.ne.s32.totalorder %s282, %s283
    %p294 = scmp.eq.s32.totalorder %s28, 0
    %p295 = por %p293, %p294
    %p296 = scmp.ne.s32.totalorder %s282, %s283
    %p297 = scmp.eq.s32.totalorder %s29, 3
    %p298 = por %p296, %p297
    %p300 = scmp.ne.s32.totalorder %s283, %s299
    %p301 = scmp.eq.s32.totalorder %s29, 0
    %p302 = por %p300, %p301
    %s303 = ssub.s32 %s31, %s38
    %p304 = scmp.eq.s32.totalorder %s303, 0
    %s306 = sadd.s32 %s305, 1
    %s307 = scalar_select %p304, %s305, %s306
    %p310 = pneg %p304
    %p311 = scmp.eq.s32.totalorder %s23, 3
    %p312 = por %p310, %p311
    %p313 = scmp.ne.s32.totalorder %s305, %s308
    %p314 = scmp.eq.s32.totalorder %s23, 0
    %p315 = por %p313, %p314
    %p316 = scmp.ne.s32.totalorder %s305, %s308
    %p317 = scmp.eq.s32.totalorder %s28, 3
    %p318 = por %p316, %p317
    %p319 = scmp.ne.s32.totalorder %s308, %s309
    %p320 = scmp.eq.s32.totalorder %s28, 0
    %p321 = por %p319, %p320
    %p322 = scmp.ne.s32.totalorder %s308, %s309
    %p323 = scmp.eq.s32.totalorder %s29, 3
    %p324 = por %p322, %p323
    %p326 = scmp.ne.s32.totalorder %s309, %s325
    %p327 = scmp.eq.s32.totalorder %s29, 0
    %p328 = por %p326, %p327
    %s329 = ssub.s32 %s31, %s38
    %p330 = scmp.eq.s32.totalorder %s329, 0
    %s332 = sadd.s32 %s331, 1
    %s333 = scalar_select %p330, %s331, %s332
    %p336 = pneg %p330
    %p337 = scmp.eq.s32.totalorder %s23, 3
    %p338 = por %p336, %p337
    %p339 = scmp.ne.s32.totalorder %s331, %s334
    %p340 = scmp.eq.s32.totalorder %s23, 0
    %p341 = por %p339, %p340
    %p342 = scmp.ne.s32.totalorder %s331, %s334
    %p343 = scmp.eq.s32.totalorder %s28, 3
    %p344 = por %p342, %p343
    %p345 = scmp.ne.s32.totalorder %s334, %s335
    %p346 = scmp.eq.s32.totalorder %s28, 0
    %p347 = por %p345, %p346
    %p348 = scmp.ne.s32.totalorder %s334, %s335
    %p349 = scmp.eq.s32.totalorder %s29, 3
    %p350 = por %p348, %p349
    %p352 = scmp.ne.s32.totalorder %s335, %s351
    %p353 = scmp.eq.s32.totalorder %s29, 0
    %p354 = por %p352, %p353
    %s355 = ssub.s32 %s31, %s38
    %p356 = scmp.eq.s32.totalorder %s355, 0
    %s358 = sadd.s32 %s357, 1
    %s359 = scalar_select %p356, %s357, %s358
    %p362 = pneg %p356
    %p363 = scmp.eq.s32.totalorder %s23, 3
    %p364 = por %p362, %p363
    %p365 = scmp.ne.s32.totalorder %s357, %s360
    %p366 = scmp.eq.s32.totalorder %s23, 0
    %p367 = por %p365, %p366
    %p368 = scmp.ne.s32.totalorder %s357, %s360
    %p369 = scmp.eq.s32.totalorder %s28, 3
    %p370 = por %p368, %p369
    %p371 = scmp.ne.s32.totalorder %s360, %s361
    %p372 = scmp.eq.s32.totalorder %s28, 0
    %p373 = por %p371, %p372
    %p374 = scmp.ne.s32.totalorder %s360, %s361
    %p375 = scmp.eq.s32.totalorder %s29, 3
    %p376 = por %p374, %p375
    %p378 = scmp.ne.s32.totalorder %s361, %s377
    %p379 = scmp.eq.s32.totalorder %s29, 0
    %p380 = por %p378, %p379
    %s382 = sadd.s32 %s381, 1
    %p385 = scmp.eq.s32.totalorder %s23, 3
    %p386 = scmp.ne.s32.totalorder %s381, %s383
    %p387 = scmp.eq.s32.totalorder %s23, 0
    %p388 = por %p386, %p387
    %p389 = scmp.ne.s32.totalorder %s381, %s383
    %p390 = scmp.eq.s32.totalorder %s28, 3
    %p391 = por %p389, %p390
    %p392 = scmp.ne.s32.totalorder %s383, %s384
    %p393 = scmp.eq.s32.totalorder %s28, 0
    %p394 = por %p392, %p393
    %p395 = scmp.ne.s32.totalorder %s383, %s384
    %p396 = scmp.eq.s32.totalorder %s29, 3
    %p397 = por %p395, %p396
    %p399 = scmp.ne.s32.totalorder %s384, %s398
    %p400 = scmp.eq.s32.totalorder %s29, 0
    %p401 = por %p399, %p400
    %s403 = sadd.s32 %s402, 1
    %p406 = scmp.eq.s32.totalorder %s23, 3
    %p407 = scmp.ne.s32.totalorder %s402, %s404
    %p408 = scmp.eq.s32.totalorder %s23, 0
    %p409 = por %p407, %p408
    %p410 = scmp.ne.s32.totalorder %s402, %s404
    %p411 = scmp.eq.s32.totalorder %s28, 3
    %p412 = por %p410, %p411
    %p413 = scmp.ne.s32.totalorder %s404, %s405
    %p414 = scmp.eq.s32.totalorder %s28, 0
    %p415 = por %p413, %p414
    %p416 = scmp.ne.s32.totalorder %s404, %s405
    %p417 = scmp.eq.s32.totalorder %s29, 3
    %p418 = por %p416, %p417
    %p420 = scmp.ne.s32.totalorder %s405, %s419
    %p421 = scmp.eq.s32.totalorder %s29, 0
    %p422 = por %p420, %p421
    %s423 = ssub.s32 %s30, %s42
    %p424 = scmp.eq.s32.totalorder %s423, 0
    %s426 = sadd.s32 %s425, 1
    %s427 = scalar_select %p424, %s425, %s426
    %p430 = pneg %p424
    %p431 = scmp.eq.s32.totalorder %s23, 3
    %p432 = por %p430, %p431
    %p433 = scmp.ne.s32.totalorder %s425, %s428
    %p434 = scmp.eq.s32.totalorder %s23, 0
    %p435 = por %p433, %p434
    %p436 = scmp.ne.s32.totalorder %s425, %s428
    %p437 = scmp.eq.s32.totalorder %s28, 3
    %p438 = por %p436, %p437
    %p439 = scmp.ne.s32.totalorder %s428, %s429
    %p440 = scmp.eq.s32.totalorder %s28, 0
    %p441 = por %p439, %p440
    %p442 = scmp.ne.s32.totalorder %s428, %s429
    %p443 = scmp.eq.s32.totalorder %s29, 3
    %p444 = por %p442, %p443
    %p446 = scmp.ne.s32.totalorder %s429, %s445
    %p447 = scmp.eq.s32.totalorder %s29, 0
    %p448 = por %p446, %p447
    %s449 = ssub.s32 %s30, %s42
    %p450 = scmp.eq.s32.totalorder %s449, 0
    %s452 = sadd.s32 %s451, 1
    %s453 = scalar_select %p450, %s451, %s452
    %p456 = pneg %p450
    %p457 = scmp.eq.s32.totalorder %s23, 3
    %p458 = por %p456, %p457
    %p459 = scmp.ne.s32.totalorder %s451, %s454
    %p460 = scmp.eq.s32.totalorder %s23, 0
    %p461 = por %p459, %p460
    %p462 = scmp.ne.s32.totalorder %s451, %s454
    %p463 = scmp.eq.s32.totalorder %s28, 3
    %p464 = por %p462, %p463
    %p465 = scmp.ne.s32.totalorder %s454, %s455
    %p466 = scmp.eq.s32.totalorder %s28, 0
    %p467 = por %p465, %p466
    %p468 = scmp.ne.s32.totalorder %s454, %s455
    %p469 = scmp.eq.s32.totalorder %s29, 3
    %p470 = por %p468, %p469
    %p472 = scmp.ne.s32.totalorder %s455, %s471
    %p473 = scmp.eq.s32.totalorder %s29, 0
    %p474 = por %p472, %p473
    %p475 = scmp.le.s32.totalorder 1, %s23
    %p476 = scmp.lt.s32.totalorder %s23, 5
    %p477 = pnand %p475, %p476
    %p478 = pneg %p477
    // Predicated region
    $region9: #{flashformer_forward.1} parent=5 // pred_check
      _
    $region10: #{flashformer_forward.1} parent=5 // pred_check_branch
      %480 = sbr.rel (%p477) target = $region12
    $region11: #{flashformer_forward.1} parent=5 // pred_region
      %s481 = ssub.s32 %s23, 1
      // Predicated region
      $region13: #{flashformer_forward.1} parent=11 // pred_check
        %p482 = pneg %p394
      $region14: #{flashformer_forward.1} parent=11 // pred_check_branch
        %484 = sbr.rel (%p482) target = $region16
      $region15: #{flashformer_forward.1} parent=11 // pred_region
        _
      $region16: #{flashformer_forward.1} parent=11 // pred_fallthru
        _
      // Predicated region
      $region17: #{flashformer_forward.1} parent=11 // pred_check
        %p485 = pneg %p415
      $region18: #{flashformer_forward.1} parent=11 // pred_check_branch
        %487 = sbr.rel (%p485) target = $region20
      $region19: #{flashformer_forward.1} parent=11 // pred_region
        _
      $region20: #{flashformer_forward.1} parent=11 // pred_fallthru
        _
    $region12: #{flashformer_forward.1} parent=5 // pred_fallthru
      _
    %p488 = scmp.lt.s32.totalorder %s23, 4
    // Predicated region
    $region21: #{flashformer_forward.1} parent=5 // pred_check
      %p489 = pneg %p488
    $region22: #{flashformer_forward.1} parent=5 // pred_check_branch
      %491 = sbr.rel (%p489) target = $region24
    $region23: #{flashformer_forward.1} parent=5 // pred_region
      // Predicated region
      $region25: #{flashformer_forward.1} parent=23 // pred_check
        %p492 = pneg %p55
      $region26: #{flashformer_forward.1} parent=23 // pred_check_branch
        %494 = sbr.rel (%p492) target = $region28
      $region27: #{flashformer_forward.1} parent=23 // pred_region
        %p495 = scmp.lt.s32.totalorder %s30, 1
        %s496 = scalar_select %p495, %s30, 1
        %s497 = smul.addr %s496, 8
        %s498 = scalar_lea.vmem %s0, %s497
      $region28: #{flashformer_forward.1} parent=23 // pred_fallthru
        _
      // Predicated region
      $region29: #{flashformer_forward.1} parent=23 // pred_check
        %p499 = pneg %p81
      $region30: #{flashformer_forward.1} parent=23 // pred_check_branch
        %501 = sbr.rel (%p499) target = $region32
      $region31: #{flashformer_forward.1} parent=23 // pred_region
        %p502 = scmp.lt.s32.totalorder %s30, 1
        %s503 = scalar_select %p502, %s30, 1
        %s504 = scalar_lea.vmem %s1, %s503
      $region32: #{flashformer_forward.1} parent=23 // pred_fallthru
        _
      // Predicated region
      $region33: #{flashformer_forward.1} parent=23 // pred_check
        %p505 = pneg %p107
      $region34: #{flashformer_forward.1} parent=23 // pred_check_branch
        %507 = sbr.rel (%p505) target = $region36
      $region35: #{flashformer_forward.1} parent=23 // pred_region
        %p508 = scmp.lt.s32.totalorder %s31, 1
        %s509 = scalar_select %p508, %s31, 1
        %s510 = smul.addr %s509, 4
        %s511 = smul.addr %s510, 4
        %s512 = scalar_lea.vmem %s2, %s511
      $region36: #{flashformer_forward.1} parent=23 // pred_fallthru
        _
      // Predicated region
      $region37: #{flashformer_forward.1} parent=23 // pred_check
        %p513 = pneg %p133
      $region38: #{flashformer_forward.1} parent=23 // pred_check_branch
        %515 = sbr.rel (%p513) target = $region40
      $region39: #{flashformer_forward.1} parent=23 // pred_region
        %p516 = scmp.lt.s32.totalorder %s31, 1
        %s517 = scalar_select %p516, %s31, 1
        %s518 = scalar_lea.vmem %s3, %s517
      $region40: #{flashformer_forward.1} parent=23 // pred_fallthru
        _
      // Predicated region
      $region41: #{flashformer_forward.1} parent=23 // pred_check
        %p519 = pneg %p159
      $region42: #{flashformer_forward.1} parent=23 // pred_check_branch
        %521 = sbr.rel (%p519) target = $region44
      $region43: #{flashformer_forward.1} parent=23 // pred_region
        %p522 = scmp.lt.s32.totalorder %s31, 1
        %s523 = scalar_select %p522, %s31, 1
        %s524 = scalar_lea.vmem %s4, %s523
      $region44: #{flashformer_forward.1} parent=23 // pred_fallthru
        _
      // Predicated region
      $region45: #{flashformer_forward.1} parent=23 // pred_check
        %p525 = pneg %p185
      $region46: #{flashformer_forward.1} parent=23 // pred_check_branch
        %527 = sbr.rel (%p525) target = $region48
      $region47: #{flashformer_forward.1} parent=23 // pred_region
        %p528 = scmp.lt.s32.totalorder %s31, 1
        %s529 = scalar_select %p528, %s31, 1
        %s530 = smul.addr %s529, 4
        %s531 = smul.addr %s530, 4
        %s532 = scalar_lea.vmem %s5, %s531
      $region48: #{flashformer_forward.1} parent=23 // pred_fallthru
        _
      // Predicated region
      $region49: #{flashformer_forward.1} parent=23 // pred_check
        %p533 = pneg %p211
      $region50: #{flashformer_forward.1} parent=23 // pred_check_branch
        %535 = sbr.rel (%p533) target = $region52
      $region51: #{flashformer_forward.1} parent=23 // pred_region
        %p536 = scmp.lt.s32.totalorder %s31, 1
        %s537 = scalar_select %p536, %s31, 1
        %s538 = scalar_lea.vmem %s6, %s537
      $region52: #{flashformer_forward.1} parent=23 // pred_fallthru
        _
      // Predicated region
      $region53: #{flashformer_forward.1} parent=23 // pred_check
        %p539 = pneg %p237
      $region54: #{flashformer_forward.1} parent=23 // pred_check_branch
        %541 = sbr.rel (%p539) target = $region56
      $region55: #{flashformer_forward.1} parent=23 // pred_region
        %p542 = scmp.lt.s32.totalorder %s31, 1
        %s543 = scalar_select %p542, %s31, 1
        %s544 = scalar_lea.vmem %s7, %s543
      $region56: #{flashformer_forward.1} parent=23 // pred_fallthru
        _
      // Predicated region
      $region57: #{flashformer_forward.1} parent=23 // pred_check
        %p545 = pneg %p263
      $region58: #{flashformer_forward.1} parent=23 // pred_check_branch
        %547 = sbr.rel (%p545) target = $region60
      $region59: #{flashformer_forward.1} parent=23 // pred_region
        %p548 = scmp.lt.s32.totalorder %s31, 1
        %s549 = scalar_select %p548, %s31, 1
        %s550 = scalar_lea.vmem %s8, %s549
      $region60: #{flashformer_forward.1} parent=23 // pred_fallthru
        _
      // Predicated region
      $region61: #{flashformer_forward.1} parent=23 // pred_check
        %p551 = pneg %p289
      $region62: #{flashformer_forward.1} parent=23 // pred_check_branch
        %553 = sbr.rel (%p551) target = $region64
      $region63: #{flashformer_forward.1} parent=23 // pred_region
        %p554 = scmp.lt.s32.totalorder %s31, 1
        %s555 = scalar_select %p554, %s31, 1
        %s556 = smul.addr %s555, 4
        %s557 = smul.addr %s556, 4
        %s558 = scalar_lea.vmem %s9, %s557
      $region64: #{flashformer_forward.1} parent=23 // pred_fallthru
        _
      // Predicated region
      $region65: #{flashformer_forward.1} parent=23 // pred_check
        %p559 = pneg %p315
      $region66: #{flashformer_forward.1} parent=23 // pred_check_branch
        %561 = sbr.rel (%p559) target = $region68
      $region67: #{flashformer_forward.1} parent=23 // pred_region
        %p562 = scmp.lt.s32.totalorder %s31, 1
        %s563 = scalar_select %p562, %s31, 1
        %s564 = scalar_lea.vmem %s10, %s563
      $region68: #{flashformer_forward.1} parent=23 // pred_fallthru
        _
      // Predicated region
      $region69: #{flashformer_forward.1} parent=23 // pred_check
        %p565 = pneg %p341
      $region70: #{flashformer_forward.1} parent=23 // pred_check_branch
        %567 = sbr.rel (%p565) target = $region72
      $region71: #{flashformer_forward.1} parent=23 // pred_region
        %p568 = scmp.lt.s32.totalorder %s31, 1
        %s569 = scalar_select %p568, %s31, 1
        %s570 = smul.addr %s569, 8
        %s571 = smul.addr %s570, 4
        %s572 = scalar_lea.vmem %s11, %s571
      $region72: #{flashformer_forward.1} parent=23 // pred_fallthru
        _
      // Predicated region
      $region73: #{flashformer_forward.1} parent=23 // pred_check
        %p573 = pneg %p367
      $region74: #{flashformer_forward.1} parent=23 // pred_check_branch
        %575 = sbr.rel (%p573) target = $region76
      $region75: #{flashformer_forward.1} parent=23 // pred_region
        %p576 = scmp.lt.s32.totalorder %s31, 1
        %s577 = scalar_select %p576, %s31, 1
        %s578 = scalar_lea.vmem %s12, %s577
      $region76: #{flashformer_forward.1} parent=23 // pred_fallthru
        _
    $region24: #{flashformer_forward.1} parent=5 // pred_fallthru
      _
    %p579 = scmp.le.s32.totalorder 1, %s23
    %p580 = scmp.lt.s32.totalorder %s23, 5
    %p581 = pnand %p579, %p580
    %p582 = pneg %p581
    // Predicated region
    $region77: #{flashformer_forward.1} parent=5 // pred_check
      _
    $region78: #{flashformer_forward.1} parent=5 // pred_check_branch
      %584 = sbr.rel (%p581) target = $region80
    $region79: #{flashformer_forward.1} parent=5 // pred_region
      %s585 = ssub.s32 %s23, 1
      %p586 = scmp.lt.s32.totalorder %s32, 1
      %s587 = scalar_select %p586, %s32, 1
      %s588 = smul.addr %s587, 8
      %s589 = scalar_lea.vmem %s0, %s588
      %p590 = pneg %p61
      %p591 = pneg %p58
      %p592 = scmp.lt.s32.totalorder %s32, 1
      %s593 = scalar_select %p592, %s32, 1
      %s594 = scalar_lea.vmem %s1, %s593
      %p595 = pneg %p87
      %p596 = pneg %p84
      %p597 = scmp.lt.s32.totalorder %s33, 1
      %s598 = scalar_select %p597, %s33, 1
      %s599 = smul.addr %s598, 4
      %s600 = smul.addr %s599, 4
      %s601 = scalar_lea.vmem %s2, %s600
      %p602 = pneg %p113
      %p603 = pneg %p110
      %p604 = scmp.lt.s32.totalorder %s33, 1
      %s605 = scalar_select %p604, %s33, 1
      %s606 = scalar_lea.vmem %s3, %s605
      %p607 = pneg %p139
      %p608 = pneg %p136
      %p609 = scmp.lt.s32.totalorder %s33, 1
      %s610 = scalar_select %p609, %s33, 1
      %s611 = scalar_lea.vmem %s4, %s610
      %p612 = pneg %p165
      %p613 = pneg %p162
      %p614 = scmp.lt.s32.totalorder %s33, 1
      %s615 = scalar_select %p614, %s33, 1
      %s616 = smul.addr %s615, 4
      %s617 = smul.addr %s616, 4
      %s618 = scalar_lea.vmem %s5, %s617
      %p619 = pneg %p191
      %p620 = pneg %p188
      %p621 = scmp.lt.s32.totalorder %s33, 1
      %s622 = scalar_select %p621, %s33, 1
      %s623 = scalar_lea.vmem %s6, %s622
      %p624 = pneg %p217
      %p625 = pneg %p214
      %p626 = scmp.lt.s32.totalorder %s33, 1
      %s627 = scalar_select %p626, %s33, 1
      %s628 = scalar_lea.vmem %s7, %s627
      %p629 = pneg %p243
      %p630 = pneg %p240
      %p631 = scmp.lt.s32.totalorder %s33, 1
      %s632 = scalar_select %p631, %s33, 1
      %s633 = scalar_lea.vmem %s8, %s632
      %p634 = pneg %p269
      %p635 = pneg %p266
      %p636 = scmp.lt.s32.totalorder %s33, 1
      %s637 = scalar_select %p636, %s33, 1
      %s638 = smul.addr %s637, 4
      %s639 = smul.addr %s638, 4
      %s640 = scalar_lea.vmem %s9, %s639
      %p641 = pneg %p295
      %p642 = pneg %p292
      %p643 = scmp.lt.s32.totalorder %s33, 1
      %s644 = scalar_select %p643, %s33, 1
      %s645 = scalar_lea.vmem %s10, %s644
      %p646 = pneg %p321
      %p647 = pneg %p318
      %p648 = scmp.lt.s32.totalorder %s33, 1
      %s649 = scalar_select %p648, %s33, 1
      %s650 = smul.addr %s649, 8
      %s651 = smul.addr %s650, 4
      %s652 = scalar_lea.vmem %s11, %s651
      %p653 = pneg %p347
      %p654 = pneg %p344
      %p655 = scmp.lt.s32.totalorder %s33, 1
      %s656 = scalar_select %p655, %s33, 1
      %s657 = scalar_lea.vmem %s12, %s656
      %p658 = pneg %p373
      %p659 = pneg %p370
      %p660 = pneg %p394
      %p661 = pneg %p391
      %p662 = pneg %p415
      %p663 = pneg %p412
      %p664 = pneg %p441
      %p665 = pneg %p438
      %p666 = scmp.lt.s32.totalorder %s32, 1
      %s667 = scalar_select %p666, %s32, 1
      %s668 = smul.addr %s667, 8
      %s669 = scalar_lea.vmem %s15, %s668
      %p670 = pneg %p467
      %p671 = pneg %p464
      %p672 = scmp.lt.s32.totalorder %s32, 1
      %s673 = scalar_select %p672, %s32, 1
      %s674 = scalar_lea.vmem %s16, %s673
      %p675 = scmp.lt.s32.totalorder %s32, 1
      %s676 = scalar_select %p675, %s32, 1
      %s677 = smul.addr %s676, 8
      %s678 = scalar_lea.vmem %s0, %s677
      %p679 = scmp.lt.s32.totalorder %s32, 1
      %s680 = scalar_select %p679, %s32, 1
      %s681 = scalar_lea.vmem %s1, %s680
      %p682 = scmp.lt.s32.totalorder %s33, 1
      %s683 = scalar_select %p682, %s33, 1
      %s684 = smul.addr %s683, 4
      %s685 = smul.addr %s684, 4
      %s686 = scalar_lea.vmem %s2, %s685
      %p687 = scmp.lt.s32.totalorder %s33, 1
      %s688 = scalar_select %p687, %s33, 1
      %s689 = scalar_lea.vmem %s3, %s688
      %p690 = scmp.lt.s32.totalorder %s33, 1
      %s691 = scalar_select %p690, %s33, 1
      %s692 = scalar_lea.vmem %s4, %s691
      %p693 = scmp.lt.s32.totalorder %s33, 1
      %s694 = scalar_select %p693, %s33, 1
      %s695 = smul.addr %s694, 4
      %s696 = smul.addr %s695, 4
      %s697 = scalar_lea.vmem %s5, %s696
      %p698 = scmp.lt.s32.totalorder %s33, 1
      %s699 = scalar_select %p698, %s33, 1
      %s700 = scalar_lea.vmem %s6, %s699
      %p701 = scmp.lt.s32.totalorder %s33, 1
      %s702 = scalar_select %p701, %s33, 1
      %s703 = scalar_lea.vmem %s7, %s702
      %p704 = scmp.lt.s32.totalorder %s33, 1
      %s705 = scalar_select %p704, %s33, 1
      %s706 = scalar_lea.vmem %s8, %s705
      %p707 = scmp.lt.s32.totalorder %s33, 1
      %s708 = scalar_select %p707, %s33, 1
      %s709 = smul.addr %s708, 4
      %s710 = smul.addr %s709, 4
      %s711 = scalar_lea.vmem %s9, %s710
      %p712 = scmp.lt.s32.totalorder %s33, 1
      %s713 = scalar_select %p712, %s33, 1
      %s714 = scalar_lea.vmem %s10, %s713
      %p715 = scmp.lt.s32.totalorder %s33, 1
      %s716 = scalar_select %p715, %s33, 1
      %s717 = smul.addr %s716, 8
      %s718 = smul.addr %s717, 4
      %s719 = scalar_lea.vmem %s11, %s718
      %p720 = scmp.lt.s32.totalorder %s33, 1
      %s721 = scalar_select %p720, %s33, 1
      %s722 = scalar_lea.vmem %s12, %s721
      %p723 = scmp.lt.s32.totalorder %s32, 1
      %s724 = scalar_select %p723, %s32, 1
      %s725 = smul.addr %s724, 8
      %s726 = scalar_lea.vmem %s15, %s725
      %p727 = scmp.lt.s32.totalorder %s32, 1
      %s728 = scalar_select %p727, %s32, 1
      %s729 = scalar_lea.vmem %s16, %s728
      %p731 = scmp.eq.s32.totalorder %s33, 0
      // Predicated region
      $region81: #{flashformer_forward.1} parent=79 // pred_check
        %p732 = pneg %p731
      $region82: #{flashformer_forward.1} parent=79 // pred_check_branch
        %734 = sbr.rel (%p732) target = $region84
      $region83: #{flashformer_forward.1} parent=79 // pred_region
        %v735 = vld [vmem:[%s678] sm:$0xff]
        %vm736 = vcmask 261120
        %737 = vst.msk [vmem:[%s726] sm:$0xff] %vm736, %v735
        %v738 = vld [vmem:[%s681] sm:$0x1]
        %vm739 = vcmask 253952
        %740 = vst.msk [vmem:[%s729] sm:$0x1] %vm739, %v738
      $region84: #{flashformer_forward.1} parent=79 // pred_fallthru
        _
      %v741 = vld [vmem:[%s726] sm:$0xff]
      %v742 = vld [vmem:[%s689] sm:$0x1]
      %v743 = vld [vmem:[%s692] sm:$0x1]
      %vm744 = vcmask 261120
      %v745 = vsel %vm744, %v741, 0.0
      %746 = vadd.xlane.f32.xlu0 %v745
      %v747 = vpop.xlane.xlu0 %746
      %v748 = vrcp.pop 32.0
      %v749 = vmul.f32 %v747, %v748
      %v750 = vsub.f32 %v741, %v749
      %v751 = vmul.f32 %v750, %v750
      %v752 = vsel %vm744, %v751, 0.0
      %753 = vadd.xlane.f32.xlu0 %v752
      %v754 = vpop.xlane.xlu0 %753
      %v755 = vmul.f32 %v754, %v748
      %v756 = vadd.f32 %v755, 1e-05
      %v757 = vrsqrt.pop %v756
      %v758 = vmul.f32 %v750, %v757
      %v760 = vlaneseq
      %v761 = vshrl.u32 %v760, 7
      %v762 = vsub.s32 0, %v761
      %v763 = vrot.slane %v742, %v762
      %v765 = vmul.f32 %v758, %v763
      %v767 = vlaneseq
      %v768 = vshrl.u32 %v767, 7
      %v769 = vsub.s32 0, %v768
      %v770 = vrot.slane %v743, %v769
      %v772 = vadd.f32 %v765, %v770
      %v773 = vpack.c.bf16 %v772, %v772
      %v774 = vld [vmem:[%s686] sm:$0xf]
      %v775 = vld [vmem:[%s686 + $0x4] sm:$0xf]
      %v776 = vld [vmem:[%s686 + $0x8] sm:$0xf]
      %v777 = vld [vmem:[%s686 + $0xc] sm:$0xf]
      %v778 = vld [vmem:[%s697] sm:$0xf]
      %v779 = vld [vmem:[%s697 + $0x4] sm:$0xf]
      %v780 = vld [vmem:[%s697 + $0x8] sm:$0xf]
      %v781 = vld [vmem:[%s697 + $0xc] sm:$0xf]
      %vm782 = vcmask 64512
      %v784 = vsel %vm782, %v774, 0
      %vm786 = vcmask 1043456
      %v788 = vsel %vm786, %v773, 0
      %790 = vmatprep.subr.bf16.mxu0 0
      %791 = vmatpush1.bf16.msra.mxu0 0
      %792 = vmatprep.subr.bf16.mxu0 0
      %793 = vmatpush1.bf16.msra.mxu0 0
      %794 = vmatprep.subr.bf16.mxu0 0
      %795 = vmatpush1.bf16.msra.mxu0 0
      %796 = vmatprep.subr.bf16.mxu0 0
      %797 = vmatpush1.bf16.msra.mxu0 0
      %798 = vmatprep.subr.bf16.mxu0 0
      %799 = vmatpush1.bf16.msra.mxu0 0
      %800 = vmatprep.subr.bf16.mxu0 0
      %801 = vmatpush1.bf16.msra.mxu0 0
      %802 = vmatprep.subr.bf16.mxu0 0
      %803 = vmatpush1.bf16.msra.mxu0 0
      %804 = vmatprep.subr.bf16.mxu0 0
      %805 = vmatpush1.bf16.msra.mxu0 %v788
      %806 = vmatprep.subr.bf16.mxu0 0
      %807 = vmatpush2.bf16.msra.mxu0 0
      %808 = vmatprep.subr.bf16.mxu0 0
      %809 = vmatpush2.bf16.msra.mxu0 0
      %810 = vmatprep.subr.bf16.mxu0 0
      %811 = vmatpush2.bf16.msra.mxu0 0
      %812 = vmatprep.subr.bf16.mxu0 0
      %813 = vmatpush2.bf16.msra.mxu0 0
      %814 = vmatprep.subr.bf16.mxu0 0
      %815 = vmatpush2.bf16.msra.mxu0 0
      %816 = vmatprep.subr.bf16.mxu0 0
      %817 = vmatpush2.bf16.msra.mxu0 0
      %818 = vmatprep.subr.bf16.mxu0 0
      %819 = vmatpush2.bf16.msra.mxu0 0
      %820 = vmatprep.subr.bf16.mxu0 0
      %821 = vmatpush2.bf16.msra.mxu0 0
      %822 = vmatprep.mubr.bf16.mxu0 0
      %823 = vmatmul.mubr.bf16.gmra.mxu0 %v784
      %v824 = vpop.f32.mrf.mxu0
      %v825 = vadd.f32 0.0, %v824
      %v826 = vpop.f32.mrf.mxu0
      %v827 = vpop.f32.mrf.mxu0
      %v828 = vpop.f32.mrf.mxu0
      %829 = vdwg.mxu0
      %v830 = vpack.c.bf16 %v825, %v825
      %832 = vrot.lane.b32.xlu0 %v773, 120
      %v833 = vpop.permute.xlu0 %832
      %v835 = vsel %vm782, %v775, 0
      %v838 = vsel %vm786, %v833, 0
      %840 = vmatprep.subr.bf16.mxu0 0
      %841 = vmatpush1.bf16.msra.mxu0 0
      %842 = vmatprep.subr.bf16.mxu0 0
      %843 = vmatpush1.bf16.msra.mxu0 0
      %844 = vmatprep.subr.bf16.mxu0 0
      %845 = vmatpush1.bf16.msra.mxu0 0
      %846 = vmatprep.subr.bf16.mxu0 0
      %847 = vmatpush1.bf16.msra.mxu0 0
      %848 = vmatprep.subr.bf16.mxu0 0
      %849 = vmatpush1.bf16.msra.mxu0 0
      %850 = vmatprep.subr.bf16.mxu0 0
      %851 = vmatpush1.bf16.msra.mxu0 0
      %852 = vmatprep.subr.bf16.mxu0 0
      %853 = vmatpush1.bf16.msra.mxu0 0
      %854 = vmatprep.subr.bf16.mxu0 0
      %855 = vmatpush1.bf16.msra.mxu0 %v838
      %856 = vmatprep.subr.bf16.mxu0 0
      %857 = vmatpush2.bf16.msra.mxu0 0
      %858 = vmatprep.subr.bf16.mxu0 0
      %859 = vmatpush2.bf16.msra.mxu0 0
      %860 = vmatprep.subr.bf16.mxu0 0
      %861 = vmatpush2.bf16.msra.mxu0 0
      %862 = vmatprep.subr.bf16.mxu0 0
      %863 = vmatpush2.bf16.msra.mxu0 0
      %864 = vmatprep.subr.bf16.mxu0 0
      %865 = vmatpush2.bf16.msra.mxu0 0
      %866 = vmatprep.subr.bf16.mxu0 0
      %867 = vmatpush2.bf16.msra.mxu0 0
      %868 = vmatprep.subr.bf16.mxu0 0
      %869 = vmatpush2.bf16.msra.mxu0 0
      %870 = vmatprep.subr.bf16.mxu0 0
      %871 = vmatpush2.bf16.msra.mxu0 0
      %872 = vmatprep.mubr.bf16.mxu0 0
      %873 = vmatmul.mubr.bf16.gmra.mxu0 %v835
      %v874 = vpop.f32.mrf.mxu0
      %v875 = vadd.f32 0.0, %v874
      %v876 = vpop.f32.mrf.mxu0
      %v877 = vpop.f32.mrf.mxu0
      %v878 = vpop.f32.mrf.mxu0
      %879 = vdwg.mxu0
      %v880 = vpack.c.bf16 %v875, %v875
      %v882 = vsel %vm782, %v880, 0
      %v885 = vsel %vm786, %v779, 0
      %887 = vmatprep.subr.bf16.mxu0 0
      %888 = vmatpush1.bf16.msra.mxu0 0
      %889 = vmatprep.subr.bf16.mxu0 0
      %890 = vmatpush1.bf16.msra.mxu0 0
      %891 = vmatprep.subr.bf16.mxu0 0
      %892 = vmatpush1.bf16.msra.mxu0 0
      %893 = vmatprep.subr.bf16.mxu0 0
      %894 = vmatpush1.bf16.msra.mxu0 0
      %895 = vmatprep.subr.bf16.mxu0 0
      %896 = vmatpush1.bf16.msra.mxu0 0
      %897 = vmatprep.subr.bf16.mxu0 0
      %898 = vmatpush1.bf16.msra.mxu0 0
      %899 = vmatprep.subr.bf16.mxu0 0
      %900 = vmatpush1.bf16.msra.mxu0 0
      %901 = vmatprep.subr.bf16.mxu0 0
      %902 = vmatpush1.bf16.msra.mxu0 %v885
      %903 = vmatprep.subr.bf16.mxu0 0
      %904 = vmatpush2.bf16.msra.mxu0 0
      %905 = vmatprep.subr.bf16.mxu0 0
      %906 = vmatpush2.bf16.msra.mxu0 0
      %907 = vmatprep.subr.bf16.mxu0 0
      %908 = vmatpush2.bf16.msra.mxu0 0
      %909 = vmatprep.subr.bf16.mxu0 0
      %910 = vmatpush2.bf16.msra.mxu0 0
      %911 = vmatprep.subr.bf16.mxu0 0
      %912 = vmatpush2.bf16.msra.mxu0 0
      %913 = vmatprep.subr.bf16.mxu0 0
      %914 = vmatpush2.bf16.msra.mxu0 0
      %915 = vmatprep.subr.bf16.mxu0 0
      %916 = vmatpush2.bf16.msra.mxu0 0
      %917 = vmatprep.subr.bf16.mxu0 0
      %918 = vmatpush2.bf16.msra.mxu0 0
      %919 = vmatprep.mubr.bf16.mxu0 0
      %920 = vmatmul.mubr.bf16.gmra.mxu0 %v882
      %v921 = vpop.f32.mrf.mxu0
      %v922 = vadd.f32 0.0, %v921
      %v923 = vpop.f32.mrf.mxu0
      %v924 = vpop.f32.mrf.mxu0
      %v925 = vpop.f32.mrf.mxu0
      %926 = vdwg.mxu0
      %v928 = vsel %vm782, %v830, 0
      %v931 = vsel %vm786, %v778, 0
      %933 = vmatprep.subr.bf16.mxu0 0
      %934 = vmatpush1.bf16.msra.mxu0 0
      %935 = vmatprep.subr.bf16.mxu0 0
      %936 = vmatpush1.bf16.msra.mxu0 0
      %937 = vmatprep.subr.bf16.mxu0 0
      %938 = vmatpush1.bf16.msra.mxu0 0
      %939 = vmatprep.subr.bf16.mxu0 0
      %940 = vmatpush1.bf16.msra.mxu0 0
      %941 = vmatprep.subr.bf16.mxu0 0
      %942 = vmatpush1.bf16.msra.mxu0 0
      %943 = vmatprep.subr.bf16.mxu0 0
      %944 = vmatpush1.bf16.msra.mxu0 0
      %945 = vmatprep.subr.bf16.mxu0 0
      %946 = vmatpush1.bf16.msra.mxu0 0
      %947 = vmatprep.subr.bf16.mxu0 0
      %948 = vmatpush1.bf16.msra.mxu0 %v931
      %949 = vmatprep.subr.bf16.mxu0 0
      %950 = vmatpush2.bf16.msra.mxu0 0
      %951 = vmatprep.subr.bf16.mxu0 0
      %952 = vmatpush2.bf16.msra.mxu0 0
      %953 = vmatprep.subr.bf16.mxu0 0
      %954 = vmatpush2.bf16.msra.mxu0 0
      %955 = vmatprep.subr.bf16.mxu0 0
      %956 = vmatpush2.bf16.msra.mxu0 0
      %957 = vmatprep.subr.bf16.mxu0 0
      %958 = vmatpush2.bf16.msra.mxu0 0
      %959 = vmatprep.subr.bf16.mxu0 0
      %960 = vmatpush2.bf16.msra.mxu0 0
      %961 = vmatprep.subr.bf16.mxu0 0
      %962 = vmatpush2.bf16.msra.mxu0 0
      %963 = vmatprep.subr.bf16.mxu0 0
      %964 = vmatpush2.bf16.msra.mxu0 0
      %965 = vmatprep.mubr.bf16.mxu0 0
      %966 = vmatmul.mubr.bf16.gmra.mxu0 %v928
      %v967 = vpop.f32.mrf.mxu0
      %v968 = vadd.f32 %v922, %v967
      %v969 = vpop.f32.mrf.mxu0
      %v970 = vpop.f32.mrf.mxu0
      %v971 = vpop.f32.mrf.mxu0
      %972 = vdwg.mxu0
      %973 = vrot.lane.b32.xlu0 %v773, 112
      %v974 = vpop.permute.xlu0 %973
      %v976 = vsel %vm782, %v776, 0
      %v979 = vsel %vm786, %v974, 0
      %981 = vmatprep.subr.bf16.mxu0 0
      %982 = vmatpush1.bf16.msra.mxu0 0
      %983 = vmatprep.subr.bf16.mxu0 0
      %984 = vmatpush1.bf16.msra.mxu0 0
      %985 = vmatprep.subr.bf16.mxu0 0
      %986 = vmatpush1.bf16.msra.mxu0 0
      %987 = vmatprep.subr.bf16.mxu0 0
      %988 = vmatpush1.bf16.msra.mxu0 0
      %989 = vmatprep.subr.bf16.mxu0 0
      %990 = vmatpush1.bf16.msra.mxu0 0
      %991 = vmatprep.subr.bf16.mxu0 0
      %992 = vmatpush1.bf16.msra.mxu0 0
      %993 = vmatprep.subr.bf16.mxu0 0
      %994 = vmatpush1.bf16.msra.mxu0 0
      %995 = vmatprep.subr.bf16.mxu0 0
      %996 = vmatpush1.bf16.msra.mxu0 %v979
      %997 = vmatprep.subr.bf16.mxu0 0
      %998 = vmatpush2.bf16.msra.mxu0 0
      %999 = vmatprep.subr.bf16.mxu0 0
      %1000 = vmatpush2.bf16.msra.mxu0 0
      %1001 = vmatprep.subr.bf16.mxu0 0
      %1002 = vmatpush2.bf16.msra.mxu0 0
      %1003 = vmatprep.subr.bf16.mxu0 0
      %1004 = vmatpush2.bf16.msra.mxu0 0
      %1005 = vmatprep.subr.bf16.mxu0 0
      %1006 = vmatpush2.bf16.msra.mxu0 0
      %1007 = vmatprep.subr.bf16.mxu0 0
      %1008 = vmatpush2.bf16.msra.mxu0 0
      %1009 = vmatprep.subr.bf16.mxu0 0
      %1010 = vmatpush2.bf16.msra.mxu0 0
      %1011 = vmatprep.subr.bf16.mxu0 0
      %1012 = vmatpush2.bf16.msra.mxu0 0
      %1013 = vmatprep.mubr.bf16.mxu0 0
      %1014 = vmatmul.mubr.bf16.gmra.mxu0 %v976
      %v1015 = vpop.f32.mrf.mxu0
      %v1016 = vadd.f32 0.0, %v1015
      %v1017 = vpop.f32.mrf.mxu0
      %v1018 = vpop.f32.mrf.mxu0
      %v1019 = vpop.f32.mrf.mxu0
      %1020 = vdwg.mxu0
      %v1021 = vpack.c.bf16 %v1016, %v1016
      %v1023 = vsel %vm782, %v1021, 0
      %v1026 = vsel %vm786, %v780, 0
      %1028 = vmatprep.subr.bf16.mxu0 0
      %1029 = vmatpush1.bf16.msra.mxu0 0
      %1030 = vmatprep.subr.bf16.mxu0 0
      %1031 = vmatpush1.bf16.msra.mxu0 0
      %1032 = vmatprep.subr.bf16.mxu0 0
      %1033 = vmatpush1.bf16.msra.mxu0 0
      %1034 = vmatprep.subr.bf16.mxu0 0
      %1035 = vmatpush1.bf16.msra.mxu0 0
      %1036 = vmatprep.subr.bf16.mxu0 0
      %1037 = vmatpush1.bf16.msra.mxu0 0
      %1038 = vmatprep.subr.bf16.mxu0 0
      %1039 = vmatpush1.bf16.msra.mxu0 0
      %1040 = vmatprep.subr.bf16.mxu0 0
      %1041 = vmatpush1.bf16.msra.mxu0 0
      %1042 = vmatprep.subr.bf16.mxu0 0
      %1043 = vmatpush1.bf16.msra.mxu0 %v1026
      %1044 = vmatprep.subr.bf16.mxu0 0
      %1045 = vmatpush2.bf16.msra.mxu0 0
      %1046 = vmatprep.subr.bf16.mxu0 0
      %1047 = vmatpush2.bf16.msra.mxu0 0
      %1048 = vmatprep.subr.bf16.mxu0 0
      %1049 = vmatpush2.bf16.msra.mxu0 0
      %1050 = vmatprep.subr.bf16.mxu0 0
      %1051 = vmatpush2.bf16.msra.mxu0 0
      %1052 = vmatprep.subr.bf16.mxu0 0
      %1053 = vmatpush2.bf16.msra.mxu0 0
      %1054 = vmatprep.subr.bf16.mxu0 0
      %1055 = vmatpush2.bf16.msra.mxu0 0
      %1056 = vmatprep.subr.bf16.mxu0 0
      %1057 = vmatpush2.bf16.msra.mxu0 0
      %1058 = vmatprep.subr.bf16.mxu0 0
      %1059 = vmatpush2.bf16.msra.mxu0 0
      %1060 = vmatprep.mubr.bf16.mxu0 0
      %1061 = vmatmul.mubr.bf16.gmra.mxu0 %v1023
      %v1062 = vpop.f32.mrf.mxu0
      %v1063 = vadd.f32 0.0, %v1062
      %v1064 = vpop.f32.mrf.mxu0
      %v1065 = vpop.f32.mrf.mxu0
      %v1066 = vpop.f32.mrf.mxu0
      %1067 = vdwg.mxu0
      %v1068 = vadd.f32 %v968, %v1063
      %1069 = vrot.lane.b32.xlu0 %v773, 104
      %v1070 = vpop.permute.xlu0 %1069
      %v1072 = vsel %vm782, %v777, 0
      %v1075 = vsel %vm786, %v1070, 0
      %1077 = vmatprep.subr.bf16.mxu0 0
      %1078 = vmatpush1.bf16.msra.mxu0 0
      %1079 = vmatprep.subr.bf16.mxu0 0
      %1080 = vmatpush1.bf16.msra.mxu0 0
      %1081 = vmatprep.subr.bf16.mxu0 0
      %1082 = vmatpush1.bf16.msra.mxu0 0
      %1083 = vmatprep.subr.bf16.mxu0 0
      %1084 = vmatpush1.bf16.msra.mxu0 0
      %1085 = vmatprep.subr.bf16.mxu0 0
      %1086 = vmatpush1.bf16.msra.mxu0 0
      %1087 = vmatprep.subr.bf16.mxu0 0
      %1088 = vmatpush1.bf16.msra.mxu0 0
      %1089 = vmatprep.subr.bf16.mxu0 0
      %1090 = vmatpush1.bf16.msra.mxu0 0
      %1091 = vmatprep.subr.bf16.mxu0 0
      %1092 = vmatpush1.bf16.msra.mxu0 %v1075
      %1093 = vmatprep.subr.bf16.mxu0 0
      %1094 = vmatpush2.bf16.msra.mxu0 0
      %1095 = vmatprep.subr.bf16.mxu0 0
      %1096 = vmatpush2.bf16.msra.mxu0 0
      %1097 = vmatprep.subr.bf16.mxu0 0
      %1098 = vmatpush2.bf16.msra.mxu0 0
      %1099 = vmatprep.subr.bf16.mxu0 0
      %1100 = vmatpush2.bf16.msra.mxu0 0
      %1101 = vmatprep.subr.bf16.mxu0 0
      %1102 = vmatpush2.bf16.msra.mxu0 0
      %1103 = vmatprep.subr.bf16.mxu0 0
      %1104 = vmatpush2.bf16.msra.mxu0 0
      %1105 = vmatprep.subr.bf16.mxu0 0
      %1106 = vmatpush2.bf16.msra.mxu0 0
      %1107 = vmatprep.subr.bf16.mxu0 0
      %1108 = vmatpush2.bf16.msra.mxu0 0
      %1109 = vmatprep.mubr.bf16.mxu0 0
      %1110 = vmatmul.mubr.bf16.gmra.mxu0 %v1072
      %v1111 = vpop.f32.mrf.mxu0
      %v1112 = vadd.f32 0.0, %v1111
      %v1113 = vpop.f32.mrf.mxu0
      %v1114 = vpop.f32.mrf.mxu0
      %v1115 = vpop.f32.mrf.mxu0
      %1116 = vdwg.mxu0
      %v1117 = vpack.c.bf16 %v1112, %v1112
      %v1119 = vsel %vm782, %v1117, 0
      %v1122 = vsel %vm786, %v781, 0
      %1124 = vmatprep.subr.bf16.mxu0 0
      %1125 = vmatpush1.bf16.msra.mxu0 0
      %1126 = vmatprep.subr.bf16.mxu0 0
      %1127 = vmatpush1.bf16.msra.mxu0 0
      %1128 = vmatprep.subr.bf16.mxu0 0
      %1129 = vmatpush1.bf16.msra.mxu0 0
      %1130 = vmatprep.subr.bf16.mxu0 0
      %1131 = vmatpush1.bf16.msra.mxu0 0
      %1132 = vmatprep.subr.bf16.mxu0 0
      %1133 = vmatpush1.bf16.msra.mxu0 0
      %1134 = vmatprep.subr.bf16.mxu0 0
      %1135 = vmatpush1.bf16.msra.mxu0 0
      %1136 = vmatprep.subr.bf16.mxu0 0
      %1137 = vmatpush1.bf16.msra.mxu0 0
      %1138 = vmatprep.subr.bf16.mxu0 0
      %1139 = vmatpush1.bf16.msra.mxu0 %v1122
      %1140 = vmatprep.subr.bf16.mxu0 0
      %1141 = vmatpush2.bf16.msra.mxu0 0
      %1142 = vmatprep.subr.bf16.mxu0 0
      %1143 = vmatpush2.bf16.msra.mxu0 0
      %1144 = vmatprep.subr.bf16.mxu0 0
      %1145 = vmatpush2.bf16.msra.mxu0 0
      %1146 = vmatprep.subr.bf16.mxu0 0
      %1147 = vmatpush2.bf16.msra.mxu0 0
      %1148 = vmatprep.subr.bf16.mxu0 0
      %1149 = vmatpush2.bf16.msra.mxu0 0
      %1150 = vmatprep.subr.bf16.mxu0 0
      %1151 = vmatpush2.bf16.msra.mxu0 0
      %1152 = vmatprep.subr.bf16.mxu0 0
      %1153 = vmatpush2.bf16.msra.mxu0 0
      %1154 = vmatprep.subr.bf16.mxu0 0
      %1155 = vmatpush2.bf16.msra.mxu0 0
      %1156 = vmatprep.mubr.bf16.mxu0 0
      %1157 = vmatmul.mubr.bf16.gmra.mxu0 %v1119
      %v1158 = vpop.f32.mrf.mxu0
      %v1159 = vadd.f32 0.0, %v1158
      %v1160 = vpop.f32.mrf.mxu0
      %v1161 = vpop.f32.mrf.mxu0
      %v1162 = vpop.f32.mrf.mxu0
      %1163 = vdwg.mxu0
      %v1164 = vadd.f32 %v1068, %v1159
      %v1165 = vadd.f32 %v741, %v1164
      %v1166 = vld [vmem:[%s700] sm:$0x1]
      %v1168 = vlaneseq
      %v1169 = vshrl.u32 %v1168, 7
      %v1170 = vsub.s32 0, %v1169
      %v1171 = vrot.slane %v1166, %v1170
      %v1173 = vadd.f32 %v1165, %v1171
      %v1174 = vld [vmem:[%s703] sm:$0x1]
      %v1175 = vld [vmem:[%s706] sm:$0x1]
      %v1176 = vsel %vm744, %v1173, 0.0
      %1177 = vadd.xlane.f32.xlu0 %v1176
      %v1178 = vpop.xlane.xlu0 %1177
      %v1179 = vmul.f32 %v1178, %v748
      %v1180 = vsub.f32 %v1173, %v1179
      %v1181 = vmul.f32 %v1180, %v1180
      %v1182 = vsel %vm744, %v1181, 0.0
      %1183 = vadd.xlane.f32.xlu0 %v1182
      %v1184 = vpop.xlane.xlu0 %1183
      %v1185 = vmul.f32 %v1184, %v748
      %v1186 = vadd.f32 %v1185, 1e-05
      %v1187 = vrsqrt.pop %v1186
      %v1188 = vmul.f32 %v1180, %v1187
      %v1190 = vlaneseq
      %v1191 = vshrl.u32 %v1190, 7
      %v1192 = vsub.s32 0, %v1191
      %v1193 = vrot.slane %v1174, %v1192
      %v1195 = vmul.f32 %v1188, %v1193
      %v1197 = vlaneseq
      %v1198 = vshrl.u32 %v1197, 7
      %v1199 = vsub.s32 0, %v1198
      %v1200 = vrot.slane %v1175, %v1199
      %v1202 = vadd.f32 %v1195, %v1200
      %v1203 = vpack.c.bf16 %v1202, %v1202
      %v1204 = vld [vmem:[%s711] sm:$0xf]
      %v1205 = vld [vmem:[%s711 + $0x4] sm:$0xf]
      %v1206 = vld [vmem:[%s711 + $0x8] sm:$0xf]
      %v1207 = vld [vmem:[%s711 + $0xc] sm:$0xf]
      %v1208 = vld [vmem:[%s714] sm:$0x1]
      %v1210 = vlaneseq
      %v1211 = vshrl.u32 %v1210, 7
      %v1212 = vsub.s32 0, %v1211
      %v1213 = vrot.slane %v1208, %v1212
      %v1219 = vunpack.c.l.b16 %v1204
      %v1220 = vunpack.c.l.b16 %v1205
      %v1221 = vunpack.c.l.b16 %v1206
      %v1222 = vunpack.c.l.b16 %v1207
      %v1223 = vpack.c.b16 %v1220, %v1219
      %v1224 = vpack.c.b16 %v1222, %v1221
      %v1228 = vsel %vm744, %v1203, 0
      %1230 = vmatprep.subr.bf16.mxu0 0
      %1231 = vmatpush1.bf16.msra.mxu0 0
      %1232 = vmatprep.subr.bf16.mxu0 0
      %1233 = vmatpush1.bf16.msra.mxu0 0
      %1234 = vmatprep.subr.bf16.mxu0 0
      %1235 = vmatpush1.bf16.msra.mxu0 0
      %1236 = vmatprep.subr.bf16.mxu0 0
      %1237 = vmatpush1.bf16.msra.mxu0 0
      %1238 = vmatprep.subr.bf16.mxu0 0
      %1239 = vmatpush1.bf16.msra.mxu0 0
      %1240 = vmatprep.subr.bf16.mxu0 0
      %1241 = vmatpush1.bf16.msra.mxu0 0
      %1242 = vmatprep.subr.bf16.mxu0 0
      %1243 = vmatpush1.bf16.msra.mxu0 %v1224
      %1244 = vmatprep.subr.bf16.mxu0 0
      %1245 = vmatpush1.bf16.msra.mxu0 %v1223
      %1246 = vmatprep.subr.bf16.mxu0 0
      %1247 = vmatpush2.bf16.msra.mxu0 0
      %1248 = vmatprep.subr.bf16.mxu0 0
      %1249 = vmatpush2.bf16.msra.mxu0 0
      %1250 = vmatprep.subr.bf16.mxu0 0
      %1251 = vmatpush2.bf16.msra.mxu0 0
      %1252 = vmatprep.subr.bf16.mxu0 0
      %1253 = vmatpush2.bf16.msra.mxu0 0
      %1254 = vmatprep.subr.bf16.mxu0 0
      %1255 = vmatpush2.bf16.msra.mxu0 0
      %1256 = vmatprep.subr.bf16.mxu0 0
      %1257 = vmatpush2.bf16.msra.mxu0 0
      %1258 = vmatprep.subr.bf16.mxu0 0
      %1259 = vmatpush2.bf16.msra.mxu0 0
      %1260 = vmatprep.subr.bf16.mxu0 0
      %1261 = vmatpush2.bf16.msra.mxu0 0
      %1262 = vmatprep.mubr.bf16.mxu0 0
      %1263 = vmatmul.mubr.bf16.gmra.mxu0 %v1228
      %v1264 = vpop.f32.mrf.mxu0
      %v1265 = vadd.f32 %v1213, %v1264
      %v1266 = vpop.f32.mrf.mxu0
      %v1267 = vpop.f32.mrf.mxu0
      %v1268 = vpop.f32.mrf.mxu0
      %1269 = vdwg.mxu0
      %v1270 = vmul.f32 %v1265, 0.5
      %v1271 = vmul.f32 %v1265, 0.70710677
      %v1272 = verf.f32.pop %v1271
      %v1273 = vadd.f32 %v1272, 1.0
      %v1274 = vmul.f32 %v1270, %v1273
      %v1275 = vpack.c.bf16 %v1274, %v1274
      %v1276 = vld [vmem:[%s719] sm:$0xf]
      %v1277 = vld [vmem:[%s719 + $0x4] sm:$0xf]
      %v1278 = vld [vmem:[%s719 + $0x8] sm:$0xf]
      %v1279 = vld [vmem:[%s719 + $0xc] sm:$0xf]
      %v1280 = vld [vmem:[%s719 + $0x10] sm:$0xf]
      %v1281 = vld [vmem:[%s719 + $0x14] sm:$0xf]
      %v1282 = vld [vmem:[%s719 + $0x18] sm:$0xf]
      %v1283 = vld [vmem:[%s719 + $0x1c] sm:$0xf]
      %v1284 = vld [vmem:[%s722] sm:$0x1]
      %v1286 = vlaneseq
      %v1287 = vshrl.u32 %v1286, 7
      %v1288 = vsub.s32 0, %v1287
      %v1289 = vrot.slane %v1284, %v1288
      %v1299 = vunpack.c.l.b16 %v1276
      %v1300 = vunpack.c.l.b16 %v1277
      %v1301 = vunpack.c.l.b16 %v1278
      %v1302 = vunpack.c.l.b16 %v1279
      %v1303 = vunpack.c.l.b16 %v1280
      %v1304 = vunpack.c.l.b16 %v1281
      %v1305 = vunpack.c.l.b16 %v1282
      %v1306 = vunpack.c.l.b16 %v1283
      %v1307 = vpack.c.b16 %v1300, %v1299
      %v1308 = vpack.c.b16 %v1302, %v1301
      %v1309 = vpack.c.b16 %v1304, %v1303
      %v1310 = vpack.c.b16 %v1306, %v1305
      %vm1315 = vcmask 523264
      %v1317 = vsel %vm1315, %v1275, 0
      %1319 = vmatprep.subr.bf16.mxu0 0
      %1320 = vmatpush1.bf16.msra.mxu0 0
      %1321 = vmatprep.subr.bf16.mxu0 0
      %1322 = vmatpush1.bf16.msra.mxu0 0
      %1323 = vmatprep.subr.bf16.mxu0 0
      %1324 = vmatpush1.bf16.msra.mxu0 0
      %1325 = vmatprep.subr.bf16.mxu0 0
      %1326 = vmatpush1.bf16.msra.mxu0 0
      %1327 = vmatprep.subr.bf16.mxu0 0
      %1328 = vmatpush1.bf16.msra.mxu0 %v1310
      %1329 = vmatprep.subr.bf16.mxu0 0
      %1330 = vmatpush1.bf16.msra.mxu0 %v1309
      %1331 = vmatprep.subr.bf16.mxu0 0
      %1332 = vmatpush1.bf16.msra.mxu0 %v1308
      %1333 = vmatprep.subr.bf16.mxu0 0
      %1334 = vmatpush1.bf16.msra.mxu0 %v1307
      %1335 = vmatprep.subr.bf16.mxu0 0
      %1336 = vmatpush2.bf16.msra.mxu0 0
      %1337 = vmatprep.subr.bf16.mxu0 0
      %1338 = vmatpush2.bf16.msra.mxu0 0
      %1339 = vmatprep.subr.bf16.mxu0 0
      %1340 = vmatpush2.bf16.msra.mxu0 0
      %1341 = vmatprep.subr.bf16.mxu0 0
      %1342 = vmatpush2.bf16.msra.mxu0 0
      %1343 = vmatprep.subr.bf16.mxu0 0
      %1344 = vmatpush2.bf16.msra.mxu0 0
      %1345 = vmatprep.subr.bf16.mxu0 0
      %1346 = vmatpush2.bf16.msra.mxu0 0
      %1347 = vmatprep.subr.bf16.mxu0 0
      %1348 = vmatpush2.bf16.msra.mxu0 0
      %1349 = vmatprep.subr.bf16.mxu0 0
      %1350 = vmatpush2.bf16.msra.mxu0 0
      %1351 = vmatprep.mubr.bf16.mxu0 0
      %1352 = vmatmul.mubr.bf16.gmra.mxu0 %v1317
      %v1353 = vpop.f32.mrf.mxu0
      %v1354 = vadd.f32 %v1289, %v1353
      %v1355 = vpop.f32.mrf.mxu0
      %v1356 = vpop.f32.mrf.mxu0
      %v1357 = vpop.f32.mrf.mxu0
      %1358 = vdwg.mxu0
      %v1359 = vadd.f32 %v1173, %v1354
      %v1360 = vsel %vm744, %v1359, 0.0
      %v1361 = vrot.slane %v1360, 4
      %v1362 = vadd.f32 %v1360, %v1361
      %v1363 = vrot.slane %v1362, 2
      %v1364 = vadd.f32 %v1362, %v1363
      %v1365 = vrot.slane %v1364, 1
      %v1366 = vadd.f32 %v1364, %v1365
      %v1367 = vrcp.pop 8.0
      %v1368 = vmul.f32 %v1366, %v1367
      %v1369 = vld [vmem:[%s729] sm:$0x1]
      %v1370 = vadd.f32 %v1368, %v1369
      %v1371 = vld [vmem:[%s13] sm:$0x1]
      %v1372 = vld [vmem:[%s14] sm:$0x1]
      %vm1373 = vcmask 253952
      %v1374 = vsel %vm1373, %v1370, 0.0
      %1375 = vadd.xlane.f32.xlu0 %v1374
      %v1376 = vpop.xlane.xlu0 %1375
      %v1377 = vmul.f32 %v1376, %v748
      %v1378 = vsub.f32 %v1370, %v1377
      %v1379 = vmul.f32 %v1378, %v1378
      %v1380 = vsel %vm1373, %v1379, 0.0
      %1381 = vadd.xlane.f32.xlu0 %v1380
      %v1382 = vpop.xlane.xlu0 %1381
      %v1383 = vmul.f32 %v1382, %v748
      %v1384 = vadd.f32 %v1383, 1e-05
      %v1385 = vrsqrt.pop %v1384
      %v1386 = vmul.f32 %v1378, %v1385
      %v1387 = vmul.f32 %v1386, %v1371
      %v1388 = vadd.f32 %v1387, %v1372
      %1389 = vst.msk [vmem:[%s729] sm:$0x1] %vm1373, %v1388
      %1390 = vst.msk [vmem:[%s726] sm:$0xff] %vm744, %v1359
      %p1391 = scmp.lt.s32.totalorder %s32, 1
      %s1392 = scalar_select %p1391, %s32, 1
      %s1393 = smul.addr %s1392, 8
      %s1394 = scalar_lea.vmem %s15, %s1393
      %p1395 = scmp.lt.s32.totalorder %s32, 1
      %s1396 = scalar_select %p1395, %s32, 1
      %s1397 = scalar_lea.vmem %s16, %s1396
      // Predicated region
      $region85: #{flashformer_forward.1} parent=79 // pred_check
        %p1398 = pneg %p438
      $region86: #{flashformer_forward.1} parent=79 // pred_check_branch
        %1400 = sbr.rel (%p1398) target = $region88
      $region87: #{flashformer_forward.1} parent=79 // pred_region
        _
      $region88: #{flashformer_forward.1} parent=79 // pred_fallthru
        _
      // Predicated region
      $region89: #{flashformer_forward.1} parent=79 // pred_check
        %p1401 = pneg %p464
      $region90: #{flashformer_forward.1} parent=79 // pred_check_branch
        %1403 = sbr.rel (%p1401) target = $region92
      $region91: #{flashformer_forward.1} parent=79 // pred_region
        _
      $region92: #{flashformer_forward.1} parent=79 // pred_fallthru
        _
    $region80: #{flashformer_forward.1} parent=5 // pred_fallthru
      _
    %p1404 = scmp.le.s32.totalorder 2, %s23
    // Predicated region
    $region93: #{flashformer_forward.1} parent=5 // pred_check
      %p1405 = pneg %p1404
    $region94: #{flashformer_forward.1} parent=5 // pred_check_branch
      %1407 = sbr.rel (%p1405) target = $region96
    $region95: #{flashformer_forward.1} parent=5 // pred_region
      %s1408 = ssub.s32 %s23, 2
      // Predicated region
      $region97: #{flashformer_forward.1} parent=95 // pred_check
        %p1409 = pneg %p444
      $region98: #{flashformer_forward.1} parent=95 // pred_check_branch
        %1411 = sbr.rel (%p1409) target = $region100
      $region99: #{flashformer_forward.1} parent=95 // pred_region
        %p1412 = scmp.lt.s32.totalorder %s34, 1
        %s1413 = scalar_select %p1412, %s34, 1
        %s1414 = smul.addr %s1413, 8
        %s1415 = scalar_lea.vmem %s15, %s1414
      $region100: #{flashformer_forward.1} parent=95 // pred_fallthru
        _
      // Predicated region
      $region101: #{flashformer_forward.1} parent=95 // pred_check
        %p1416 = pneg %p470
      $region102: #{flashformer_forward.1} parent=95 // pred_check_branch
        %1418 = sbr.rel (%p1416) target = $region104
      $region103: #{flashformer_forward.1} parent=95 // pred_region
        %p1419 = scmp.lt.s32.totalorder %s34, 1
        %s1420 = scalar_select %p1419, %s34, 1
        %s1421 = scalar_lea.vmem %s16, %s1420
      $region104: #{flashformer_forward.1} parent=95 // pred_fallthru
        _
    $region96: #{flashformer_forward.1} parent=5 // pred_fallthru
      _
  $region6: #{flashformer_forward.1} parent=0 // loop_footer
    %s27 = sadd.s32 1, %s23
  $region7: #{flashformer_forward.1} parent=0 // loop_footer_branch
    %22 = sbr.rel target = $region3
  $region8: #{flashformer_forward.1} parent=0 // loop_exit
    _

</llo_original>
